<compile_context>
chip_gen: v7x
topology: tpu7x:2x2x1
jax: 0.10.0
libtpu: 0.0.40
codegen_flags: <defaults>
</compile_context>

<pallas_src>
import functools

import jax
import jax.numpy as jnp
from jax import lax
from jax.experimental import pallas as pl
from jax.experimental.pallas import tpu as pltpu

LN_EPS = 1e-6                       # SparseConvNeXtLayerNorm default eps
_HIGH = lax.Precision.HIGHEST       # reference (XLA) path only


def _round_up(a, b):
    return (a + b - 1) // b * b


def _gelu_erf(x):
    # erf-form GELU (matches torch.nn.GELU()) via Abramowitz & Stegun 7.1.26.
    # exp -> EUP, 1/(1+p*z) -> approximate EUP reciprocal; |err| ~ 2e-4.
    p = 0.3275911
    a1, a2, a3, a4, a5 = (0.254829592, -0.284496736, 1.421413741,
                          -1.453152027, 1.061405429)
    z = jnp.abs(x) * 0.7071067811865476
    t = pl.reciprocal(1.0 + p * z, approx=True)
    poly = t * (a1 + t * (a2 + t * (a3 + t * (a4 + t * a5))))
    phi = 1.0 - 0.5 * poly * jnp.exp(-z * z)          # Phi(|x|)
    return x * jnp.where(x >= 0, phi, 1.0 - phi)


# --------------------------- fused Pallas kernel ------------------------------
def _fused_kernel(x_ref, wtap_ref, mask_ref, b1_ref, lnw_ref, lnb_ref,
                  w2t_ref, b2_ref, w3t_ref, bout_ref, wrt_ref, o_ref,
                  *, TM, P0, offs):
    # grid = (batch n, parity class q = qd*4 + qh*2 + qw, voxel chunk m)
    qq = pl.program_id(1)
    m = pl.program_id(2)

    # Chunk m needs slab rows m and m+1 (TM >= P0 guarantees the halo fits in
    # one extra row); every shifted view below is a static lane slice.
    xa = x_ref[0, :, m, :]                           # (C, TM)
    xb = x_ref[0, :, m + 1, :]                       # (C, TM)
    xcat = jnp.concatenate([xa, xb], axis=-1)        # (C, 2*TM)

    # ---- depthwise ConvTranspose3d(k=3, s=2, p=1), polyphase (<=8 taps) ----
    wt = wtap_ref[0]                                 # (8 taps, C, 1)
    y = wt[0] * xcat[:, 0:TM]
    for t in range(1, 8):
        y = y + wt[t] * xcat[:, offs[t]:offs[t] + TM]
    y = y + b1_ref[...]

    # ---- LayerNorm over channels (channels_first, biased variance), f32 ----
    u = jnp.mean(y, axis=0, keepdims=True)
    yc = y - u
    var = jnp.mean(yc * yc, axis=0, keepdims=True)
    yn = yc * lax.rsqrt(var + LN_EPS) * lnw_ref[...] + lnb_ref[...]

    # ---- conv2 (1x1x1) -> GELU -> conv3 (1x1x1); bf16 MXU in, f32 accum ----
    h = jnp.dot(w2t_ref[...], yn.astype(w2t_ref.dtype),
                preferred_element_type=jnp.float32) + b2_ref[...]
    h = _gelu_erf(h)
    o = jnp.dot(w3t_ref[...], h.astype(w3t_ref.dtype),
                preferred_element_type=jnp.float32) + bout_ref[...]

    # ---- F.pad(1,0,1,0,1,0) border + res_conv, gated per parity class ----
    @pl.when(qq != 7)
    def _():
        # zero the leading output plane of each even-parity axis
        o_ref[0, 0, :, :] = (o * mask_ref[0]).astype(o_ref.dtype)

    @pl.when(qq == 7)
    def _():
        # all-odd parity: mask is all-ones; add ConvTranspose3d(k=1,s=2) res
        xs = xcat[:, P0:P0 + TM].astype(wrt_ref.dtype)   # original x chunk
        r = jnp.dot(wrt_ref[...], xs, preferred_element_type=jnp.float32)
        o_ref[0, 0, :, :] = (o + r).astype(o_ref.dtype)


# ------------------------------ host-side prep --------------------------------
def _build_tap_weights(w1):
    """Polyphase tap table (8 parity classes, 8 taps, C, 1) from (C,1,3,3,3)."""
    w = w1[:, 0]                                   # (C, 3, 3, 3)
    C = w.shape[0]
    zero = jnp.zeros((C,), w.dtype)

    def k_index(q_bit, t_bit):
        if q_bit == 1:
            return 1 if t_bit == 1 else None       # odd positions: center tap
        return 2 if t_bit == 0 else 0              # even positions: taps 2, 0

    qs = []
    for q in range(8):
        qd, qh, qw = (q >> 2) & 1, (q >> 1) & 1, q & 1
        taps = []
        for t in range(8):
            td, th, tw = (t >> 2) & 1, (t >> 1) & 1, t & 1
            kd, kh, kw = k_index(qd, td), k_index(qh, th), k_index(qw, tw)
            if kd is None or kh is None or kw is None:
                taps.append(zero)
            else:
                taps.append(w[:, kd, kh, kw])
        qs.append(jnp.stack(taps, axis=0))         # (8, C)
    return jnp.stack(qs, axis=0)[..., None]        # (8, 8, C, 1)


def _build_parity_masks(D, H, W, M_pad):
    """(8, 1, M_pad) combined border masks (F.pad front plane) per parity."""
    m = jnp.arange(M_pad, dtype=jnp.int32)
    a = ((m // (H * W)) > 0).astype(jnp.float32)
    b = (((m // W) % H) > 0).astype(jnp.float32)
    c = ((m % W) > 0).astype(jnp.float32)
    ones = jnp.ones((M_pad,), jnp.float32)
    masks = []
    for q in range(8):
        qd, qh, qw = (q >> 2) & 1, (q >> 1) & 1, q & 1
        mk = ones
        if qd == 0:
            mk = mk * a
        if qh == 0:
            mk = mk * b
        if qw == 0:
            mk = mk * c
        masks.append(mk)
    return jnp.stack(masks, axis=0).reshape(8, 1, M_pad)


def mednext_up_block(x_ncdhw, params, m_chunk=4096, out_dtype=None):
    """MedNeXtUpBlock forward: (N, Cin, D, H, W) -> (N, Cout, 2D, 2H, 2W)."""
    N, C, D, H, W = x_ncdhw.shape
    Ch = params["w2"].shape[1]
    Cout = params["w3"].shape[1]
    M = D * H * W
    HW = H * W
    P0 = HW + W + 1                     # "index -1" halo along d, h, w
    out_dtype = x_ncdhw.dtype if out_dtype is None else out_dtype

    # voxel chunk: multiple of 128 (lane-dense, unmasked stores) and >= halo
    TM = _round_up(max(128, min(m_chunk, M), P0), 128)
    M_pad = _round_up(M, TM)
    MT = M_pad // TM
    S = MT + 1                          # one extra slab row for the halo

    # NCDHW -> (N, C, S, TM) slab: free reshapes + one small pad
    x = x_ncdhw.astype(jnp.float32).reshape(N, C, M)
    x = jnp.pad(x, ((0, 0), (0, 0), (P0, S * TM - P0 - M)))
    x = x.reshape(N, C, S, TM)

    wtap = _build_tap_weights(params["w1"].astype(jnp.float32))   # (8,8,C,1)
    masks = _build_parity_masks(D, H, W, M_pad)                   # (8,1,M_pad)

    offs = tuple(td * HW + th * W + tw
                 for td in (0, 1) for th in (0, 1) for tw in (0, 1))
    kernel = functools.partial(_fused_kernel, TM=TM, P0=P0, offs=offs)
    fixed = lambda n, q, m: (0, 0)

    # VMEM budget: slab + bf16 output block (double buffered) + live tiles;
    # cap below physical VMEM (v7x: 64 MiB/TC) to keep compiler headroom.
    est = (2 * C * S * TM * 4                      # x slab (2 buffers)
           + 2 * Cout * TM * 2                     # bf16 out block (2 buffers)
           + 2 * TM * 4                            # mask block
           + (4 * C + 2 * Ch + 2 * Cout) * TM * 4  # live intermediates
           + 2 * (64 * C * 4 + 2 * Ch * C + 2 * Cout * Ch + 2 * Cout * C))
    vmem_limit = int(min(max(2 * est, 32 * 1024 * 1024), 48 * 1024 * 1024))

    op = pl.pallas_call(
        kernel,
        out_shape=jax.ShapeDtypeStruct((N, 8, Cout, M_pad), jnp.bfloat16),
        grid_spec=pltpu.PrefetchScalarGridSpec(
            num_scalar_prefetch=0,
            grid=(N, 8, MT),
            in_specs=[
                # full per-batch slab, constant across (q, m): DMA'd once per n
                pl.BlockSpec((1, C, S, TM), lambda n, q, m: (n, 0, 0, 0)),
                pl.BlockSpec((1, 8, C, 1), lambda n, q, m: (q, 0, 0, 0)),
                pl.BlockSpec((1, 1, TM), lambda n, q, m: (q, 0, m)),
                pl.BlockSpec((C, 1), fixed),        # b1
                pl.BlockSpec((C, 1), fixed),        # ln_w
                pl.BlockSpec((C, 1), fixed),        # ln_b
                pl.BlockSpec((Ch, C), fixed),       # w2^T (bf16)
                pl.BlockSpec((Ch, 1), fixed),       # b2
                pl.BlockSpec((Cout, Ch), fixed),    # w3^T (bf16)
                pl.BlockSpec((Cout, 1), fixed),     # b3 + br
                pl.BlockSpec((Cout, C), fixed),     # wr^T (bf16)
            ],
            out_specs=pl.BlockSpec((1, 1, Cout, TM),
                                   lambda n, q, m: (n, q, 0, m)),
        ),
        compiler_params=pltpu.CompilerParams(
            dimension_semantics=("parallel", "parallel", "arbitrary"),
            vmem_limit_bytes=vmem_limit),
    )(x, wtap, masks,
      params["b1"].reshape(C, 1).astype(jnp.float32),
      params["ln_w"].reshape(C, 1).astype(jnp.float32),
      params["ln_b"].reshape(C, 1).astype(jnp.float32),
      params["w2"].T.astype(jnp.bfloat16),
      params["b2"].reshape(Ch, 1).astype(jnp.float32),
      params["w3"].T.astype(jnp.bfloat16),
      (params["b3"] + params["br"]).reshape(Cout, 1).astype(jnp.float32),
      params["wr"].T.astype(jnp.bfloat16))

    # parity-major (n, qd, qh, qw, cout, a, b, c) -> interleaved NCDHW:
    # out[n, co, 2a+qd, 2b+qh, 2c+qw]; one XLA transpose (reads bf16).
    op = op[:, :, :, :M].reshape(N, 2, 2, 2, Cout, D, H, W)
    out = jnp.transpose(op, (0, 4, 5, 1, 6, 2, 7, 3)).astype(out_dtype)
    return out.reshape(N, Cout, 2 * D, 2 * H, 2 * W)


# -------------------- pure-JAX (XLA) reference for checking ------------------
def mednext_up_block_reference(x_ncdhw, params):
    N, C, D, H, W = x_ncdhw.shape
    Cout = params["w3"].shape[1]
    x = jnp.transpose(x_ncdhw, (0, 2, 3, 4, 1)).astype(jnp.float32)

    w1r = jnp.transpose(jnp.flip(params["w1"], axis=(2, 3, 4)),
                        (2, 3, 4, 1, 0))                  # DHWIO, I=1, O=C
    dn1 = lax.conv_dimension_numbers(x.shape, w1r.shape,
                                     ("NDHWC", "DHWIO", "NDHWC"))
    y = lax.conv_general_dilated(
        x, w1r, window_strides=(1, 1, 1), padding=[(1, 1)] * 3,
        lhs_dilation=(2, 2, 2), dimension_numbers=dn1,
        feature_group_count=C, precision=_HIGH) + params["b1"]

    u = y.mean(-1, keepdims=True)
    v = ((y - u) ** 2).mean(-1, keepdims=True)
    yn = (y - u) / jnp.sqrt(v + LN_EPS) * params["ln_w"] + params["ln_b"]
    h = jax.nn.gelu(
        jnp.einsum("...c,ce->...e", yn, params["w2"], precision=_HIGH)
        + params["b2"], approximate=False)
    x1 = (jnp.einsum("...e,eo->...o", h, params["w3"], precision=_HIGH)
          + params["b3"])

    wrr = params["wr"].reshape(1, 1, 1, C, Cout)
    dn2 = lax.conv_dimension_numbers(x.shape, wrr.shape,
                                     ("NDHWC", "DHWIO", "NDHWC"))
    res = lax.conv_general_dilated(
        x, wrr, window_strides=(1, 1, 1), padding=[(0, 0)] * 3,
        lhs_dilation=(2, 2, 2), dimension_numbers=dn2,
        precision=_HIGH) + params["br"]

    pad = ((0, 0), (1, 0), (1, 0), (1, 0), (0, 0))
    out = jnp.pad(x1, pad) + jnp.pad(res, pad)
    return jnp.transpose(out, (0, 4, 1, 2, 3))


if __name__ == "__main__":
    N, Cin, Cout, exp_r = 2, 4, 2, 4
    D = H = W = 8
    Ch = exp_r * Cin

    ks = jax.random.split(jax.random.PRNGKey(0), 11)
    params = {
        "w1": 0.2 * jax.random.normal(ks[0], (Cin, 1, 3, 3, 3), jnp.float32),
        "b1": 0.1 * jax.random.normal(ks[1], (Cin,), jnp.float32),
        "ln_w": 1.0 + 0.1 * jax.random.normal(ks[2], (Cin,), jnp.float32),
        "ln_b": 0.1 * jax.random.normal(ks[3], (Cin,), jnp.float32),
        "w2": 0.2 * jax.random.normal(ks[4], (Cin, Ch), jnp.float32),
        "b2": 0.1 * jax.random.normal(ks[5], (Ch,), jnp.float32),
        "w3": 0.2 * jax.random.normal(ks[6], (Ch, Cout), jnp.float32),
        "b3": 0.1 * jax.random.normal(ks[7], (Cout,), jnp.float32),
        "wr": 0.2 * jax.random.normal(ks[8], (Cin, Cout), jnp.float32),
        "br": 0.1 * jax.random.normal(ks[9], (Cout,), jnp.float32),
    }
    x = jax.random.normal(ks[10], (N, Cin, D, H, W), jnp.float32)

    # m_chunk=256 (< M=512) exercises the voxel-chunk grid axis (MT=2).
    fwd = jax.jit(lambda xx, pp: mednext_up_block(xx, pp, m_chunk=256))
    out = jax.block_until_ready(fwd(x, params))
    assert out.shape == (N, Cout, 2 * D, 2 * H, 2 * W), out.shape

    ref = mednext_up_block_reference(x, params)
    max_err = float(jnp.max(jnp.abs(out - ref)))
    # bf16 kernel output + bf16 MXU inputs (f32 accumulate) + approx EUP erf:
    # compare against the f32 reference with a matching tolerance.
    assert jnp.allclose(out, ref, atol=5e-2, rtol=5e-2), max_err

    print("KERNEL_OK")
</pallas_src>

<mosaic_0001>
module attributes {stable_mosaic.version = 11 : i64} {
  func.func @_fused_kernel(%arg0: i32, %arg1: i32, %arg2: i32, %arg3: memref<1x4x3x256xf32, #tpu.memory_space<vmem>>, %arg4: memref<1x8x4x1xf32, #tpu.memory_space<vmem>>, %arg5: memref<1x1x256xf32, #tpu.memory_space<vmem>>, %arg6: memref<4x1xf32, #tpu.memory_space<vmem>>, %arg7: memref<4x1xf32, #tpu.memory_space<vmem>>, %arg8: memref<4x1xf32, #tpu.memory_space<vmem>>, %arg9: memref<16x4xbf16, #tpu.memory_space<vmem>>, %arg10: memref<16x1xf32, #tpu.memory_space<vmem>>, %arg11: memref<2x16xbf16, #tpu.memory_space<vmem>>, %arg12: memref<2x1xf32, #tpu.memory_space<vmem>>, %arg13: memref<2x4xbf16, #tpu.memory_space<vmem>>, %arg14: memref<1x1x2x256xbf16, #tpu.memory_space<vmem>>) attributes {dimension_semantics = [#tpu.dimension_semantics<parallel>, #tpu.dimension_semantics<parallel>, #tpu.dimension_semantics<arbitrary>], iteration_bounds = array<i64: 2, 8, 2>, scalar_prefetch = 0 : i64, scratch_operands = 0 : i64, tpu.core_type = #tpu.core_type<tc>, window_params = [{transform_indices = @transform_0, window_bounds = array<i64: 1, 4, 3, 256>}, {transform_indices = @transform_1, window_bounds = array<i64: 1, 8, 4, 1>}, {transform_indices = @transform_2, window_bounds = array<i64: 1, 1, 256>}, {pipeline_mode = #tpu.pipeline_mode<synchronous>, transform_indices = @transform_3, window_bounds = array<i64: 4, 1>}, {pipeline_mode = #tpu.pipeline_mode<synchronous>, transform_indices = @transform_4, window_bounds = array<i64: 4, 1>}, {pipeline_mode = #tpu.pipeline_mode<synchronous>, transform_indices = @transform_5, window_bounds = array<i64: 4, 1>}, {pipeline_mode = #tpu.pipeline_mode<synchronous>, transform_indices = @transform_6, window_bounds = array<i64: 16, 4>}, {pipeline_mode = #tpu.pipeline_mode<synchronous>, transform_indices = @transform_7, window_bounds = array<i64: 16, 1>}, {pipeline_mode = #tpu.pipeline_mode<synchronous>, transform_indices = @transform_8, window_bounds = array<i64: 2, 16>}, {pipeline_mode = #tpu.pipeline_mode<synchronous>, transform_indices = @transform_9, window_bounds = array<i64: 2, 1>}, {pipeline_mode = #tpu.pipeline_mode<synchronous>, transform_indices = @transform_10, window_bounds = array<i64: 2, 4>}, {transform_indices = @transform_11, window_bounds = array<i64: 1, 1, 2, 256>}]} {
    %c0 = arith.constant 0 : index
    %c0_0 = arith.constant 0 : index
    %0 = arith.index_cast %arg2 : i32 to index
    %c0_1 = arith.constant 0 : index
    %1 = vector.load %arg3[%c0, %c0_0, %0, %c0_1] : memref<1x4x3x256xf32, #tpu.memory_space<vmem>>, vector<1x4x1x256xf32>
    %2 = vector.shape_cast %1 : vector<1x4x1x256xf32> to vector<4x256xf32>
    %c1_i32 = arith.constant 1 : i32
    %3 = arith.addi %arg2, %c1_i32 : i32
    %c0_2 = arith.constant 0 : index
    %c0_3 = arith.constant 0 : index
    %4 = arith.index_cast %3 : i32 to index
    %c0_4 = arith.constant 0 : index
    %5 = vector.load %arg3[%c0_2, %c0_3, %4, %c0_4] : memref<1x4x3x256xf32, #tpu.memory_space<vmem>>, vector<1x4x1x256xf32>
    %6 = vector.shape_cast %5 : vector<1x4x1x256xf32> to vector<4x256xf32>
    %7 = tpu.concatenate %2, %6 in 1 : vector<4x256xf32>, vector<4x256xf32> -> vector<4x512xf32>
    %c0_5 = arith.constant 0 : index
    %c0_6 = arith.constant 0 : index
    %c0_7 = arith.constant 0 : index
    %c0_8 = arith.constant 0 : index
    %8 = vector.load %arg4[%c0_5, %c0_6, %c0_7, %c0_8] : memref<1x8x4x1xf32, #tpu.memory_space<vmem>>, vector<1x8x4x1xf32>
    %9 = vector.shape_cast %8 : vector<1x8x4x1xf32> to vector<8x4x1xf32>
    %10 = vector.extract_strided_slice %9 {offsets = [0, 0, 0], sizes = [1, 4, 1], strides = [1, 1, 1]} : vector<8x4x1xf32> to vector<1x4x1xf32>
    %11 = vector.shape_cast %10 : vector<1x4x1xf32> to vector<4x1xf32>
    %12 = vector.extract_strided_slice %7 {offsets = [0, 0], sizes = [4, 256], strides = [1, 1]} : vector<4x512xf32> to vector<4x256xf32>
    %13 = vector.broadcast %11 : vector<4x1xf32> to vector<4x256xf32>
    %14 = arith.mulf %13, %12 : vector<4x256xf32>
    %15 = vector.extract_strided_slice %9 {offsets = [1, 0, 0], sizes = [1, 4, 1], strides = [1, 1, 1]} : vector<8x4x1xf32> to vector<1x4x1xf32>
    %16 = vector.shape_cast %15 : vector<1x4x1xf32> to vector<4x1xf32>
    %17 = vector.extract_strided_slice %7 {offsets = [0, 1], sizes = [4, 256], strides = [1, 1]} : vector<4x512xf32> to vector<4x256xf32>
    %18 = vector.broadcast %16 : vector<4x1xf32> to vector<4x256xf32>
    %19 = arith.mulf %18, %17 : vector<4x256xf32>
    %20 = arith.addf %14, %19 : vector<4x256xf32>
    %21 = vector.extract_strided_slice %9 {offsets = [2, 0, 0], sizes = [1, 4, 1], strides = [1, 1, 1]} : vector<8x4x1xf32> to vector<1x4x1xf32>
    %22 = vector.shape_cast %21 : vector<1x4x1xf32> to vector<4x1xf32>
    %23 = vector.extract_strided_slice %7 {offsets = [0, 8], sizes = [4, 256], strides = [1, 1]} : vector<4x512xf32> to vector<4x256xf32>
    %24 = vector.broadcast %22 : vector<4x1xf32> to vector<4x256xf32>
    %25 = arith.mulf %24, %23 : vector<4x256xf32>
    %26 = arith.addf %20, %25 : vector<4x256xf32>
    %27 = vector.extract_strided_slice %9 {offsets = [3, 0, 0], sizes = [1, 4, 1], strides = [1, 1, 1]} : vector<8x4x1xf32> to vector<1x4x1xf32>
    %28 = vector.shape_cast %27 : vector<1x4x1xf32> to vector<4x1xf32>
    %29 = vector.extract_strided_slice %7 {offsets = [0, 9], sizes = [4, 256], strides = [1, 1]} : vector<4x512xf32> to vector<4x256xf32>
    %30 = vector.broadcast %28 : vector<4x1xf32> to vector<4x256xf32>
    %31 = arith.mulf %30, %29 : vector<4x256xf32>
    %32 = arith.addf %26, %31 : vector<4x256xf32>
    %33 = vector.extract_strided_slice %9 {offsets = [4, 0, 0], sizes = [1, 4, 1], strides = [1, 1, 1]} : vector<8x4x1xf32> to vector<1x4x1xf32>
    %34 = vector.shape_cast %33 : vector<1x4x1xf32> to vector<4x1xf32>
    %35 = vector.extract_strided_slice %7 {offsets = [0, 64], sizes = [4, 256], strides = [1, 1]} : vector<4x512xf32> to vector<4x256xf32>
    %36 = vector.broadcast %34 : vector<4x1xf32> to vector<4x256xf32>
    %37 = arith.mulf %36, %35 : vector<4x256xf32>
    %38 = arith.addf %32, %37 : vector<4x256xf32>
    %39 = vector.extract_strided_slice %9 {offsets = [5, 0, 0], sizes = [1, 4, 1], strides = [1, 1, 1]} : vector<8x4x1xf32> to vector<1x4x1xf32>
    %40 = vector.shape_cast %39 : vector<1x4x1xf32> to vector<4x1xf32>
    %41 = vector.extract_strided_slice %7 {offsets = [0, 65], sizes = [4, 256], strides = [1, 1]} : vector<4x512xf32> to vector<4x256xf32>
    %42 = vector.broadcast %40 : vector<4x1xf32> to vector<4x256xf32>
    %43 = arith.mulf %42, %41 : vector<4x256xf32>
    %44 = arith.addf %38, %43 : vector<4x256xf32>
    %45 = vector.extract_strided_slice %9 {offsets = [6, 0, 0], sizes = [1, 4, 1], strides = [1, 1, 1]} : vector<8x4x1xf32> to vector<1x4x1xf32>
    %46 = vector.shape_cast %45 : vector<1x4x1xf32> to vector<4x1xf32>
    %47 = vector.extract_strided_slice %7 {offsets = [0, 72], sizes = [4, 256], strides = [1, 1]} : vector<4x512xf32> to vector<4x256xf32>
    %48 = vector.broadcast %46 : vector<4x1xf32> to vector<4x256xf32>
    %49 = arith.mulf %48, %47 : vector<4x256xf32>
    %50 = arith.addf %44, %49 : vector<4x256xf32>
    %51 = vector.extract_strided_slice %9 {offsets = [7, 0, 0], sizes = [1, 4, 1], strides = [1, 1, 1]} : vector<8x4x1xf32> to vector<1x4x1xf32>
    %52 = vector.shape_cast %51 : vector<1x4x1xf32> to vector<4x1xf32>
    %53 = vector.extract_strided_slice %7 {offsets = [0, 73], sizes = [4, 256], strides = [1, 1]} : vector<4x512xf32> to vector<4x256xf32>
    %54 = vector.broadcast %52 : vector<4x1xf32> to vector<4x256xf32>
    %55 = arith.mulf %54, %53 : vector<4x256xf32>
    %56 = arith.addf %50, %55 : vector<4x256xf32>
    %c0_9 = arith.constant 0 : index
    %c0_10 = arith.constant 0 : index
    %57 = vector.load %arg6[%c0_9, %c0_10] : memref<4x1xf32, #tpu.memory_space<vmem>>, vector<4x1xf32>
    %58 = vector.broadcast %57 : vector<4x1xf32> to vector<4x256xf32>
    %59 = arith.addf %56, %58 : vector<4x256xf32>
    %cst = arith.constant dense<0.000000e+00> : vector<256xf32>
    %60 = vector.multi_reduction <add>, %59, %cst [0] : vector<4x256xf32> to vector<256xf32>
    %61 = vector.shape_cast %60 : vector<256xf32> to vector<1x256xf32>
    %cst_11 = arith.constant 4.000000e+00 : f32
    %62 = vector.broadcast %cst_11 : f32 to vector<1x256xf32>
    %63 = arith.divf %61, %62 : vector<1x256xf32>
    %64 = vector.broadcast %63 : vector<1x256xf32> to vector<4x256xf32>
    %65 = arith.subf %59, %64 : vector<4x256xf32>
    %66 = arith.mulf %65, %65 : vector<4x256xf32>
    %cst_12 = arith.constant dense<0.000000e+00> : vector<256xf32>
    %67 = vector.multi_reduction <add>, %66, %cst_12 [0] : vector<4x256xf32> to vector<256xf32>
    %68 = vector.shape_cast %67 : vector<256xf32> to vector<1x256xf32>
    %cst_13 = arith.constant 4.000000e+00 : f32
    %69 = vector.broadcast %cst_13 : f32 to vector<1x256xf32>
    %70 = arith.divf %68, %69 : vector<1x256xf32>
    %cst_14 = arith.constant 9.99999997E-7 : f32
    %71 = vector.broadcast %cst_14 : f32 to vector<1x256xf32>
    %72 = arith.addf %70, %71 : vector<1x256xf32>
    %73 = math.rsqrt %72 : vector<1x256xf32>
    %74 = vector.broadcast %73 : vector<1x256xf32> to vector<4x256xf32>
    %75 = arith.mulf %65, %74 : vector<4x256xf32>
    %c0_15 = arith.constant 0 : index
    %c0_16 = arith.constant 0 : index
    %76 = vector.load %arg7[%c0_15, %c0_16] : memref<4x1xf32, #tpu.memory_space<vmem>>, vector<4x1xf32>
    %77 = vector.broadcast %76 : vector<4x1xf32> to vector<4x256xf32>
    %78 = arith.mulf %75, %77 : vector<4x256xf32>
    %c0_17 = arith.constant 0 : index
    %c0_18 = arith.constant 0 : index
    %79 = vector.load %arg8[%c0_17, %c0_18] : memref<4x1xf32, #tpu.memory_space<vmem>>, vector<4x1xf32>
    %80 = vector.broadcast %79 : vector<4x1xf32> to vector<4x256xf32>
    %81 = arith.addf %78, %80 : vector<4x256xf32>
    %c0_19 = arith.constant 0 : index
    %c0_20 = arith.constant 0 : index
    %82 = vector.load %arg9[%c0_19, %c0_20] : memref<16x4xbf16, #tpu.memory_space<vmem>>, vector<16x4xbf16>
    %83 = arith.truncf %81 : vector<4x256xf32> to vector<4x256xbf16>
    %cst_21 = arith.constant dense<0.000000e+00> : vector<16x256xf32>
    %84 = tpu.matmul %82, %83, %cst_21 {dimension_numbers = #tpu.dot_dimension_numbers<[1], [0], [0], [1], [0, 0, 1, 1], [], []>} : vector<16x4xbf16>, vector<4x256xbf16>, vector<16x256xf32> -> vector<16x256xf32>
    %c0_22 = arith.constant 0 : index
    %c0_23 = arith.constant 0 : index
    %85 = vector.load %arg10[%c0_22, %c0_23] : memref<16x1xf32, #tpu.memory_space<vmem>>, vector<16x1xf32>
    %86 = vector.broadcast %85 : vector<16x1xf32> to vector<16x256xf32>
    %87 = arith.addf %84, %86 : vector<16x256xf32>
    %88 = math.absf %87 : vector<16x256xf32>
    %cst_24 = arith.constant 0.707106769 : f32
    %89 = vector.broadcast %cst_24 : f32 to vector<16x256xf32>
    %90 = arith.mulf %88, %89 : vector<16x256xf32>
    %cst_25 = arith.constant 0.327591091 : f32
    %91 = vector.broadcast %cst_25 : f32 to vector<16x256xf32>
    %92 = arith.mulf %91, %90 : vector<16x256xf32>
    %cst_26 = arith.constant 1.000000e+00 : f32
    %93 = vector.broadcast %cst_26 : f32 to vector<16x256xf32>
    %94 = arith.addf %93, %92 : vector<16x256xf32>
    %95 = tpu.reciprocal %94 {approx = true} : vector<16x256xf32> -> vector<16x256xf32>
    %cst_27 = arith.constant 1.06140542 : f32
    %96 = vector.broadcast %cst_27 : f32 to vector<16x256xf32>
    %97 = arith.mulf %95, %96 : vector<16x256xf32>
    %cst_28 = arith.constant -1.45315206 : f32
    %98 = vector.broadcast %cst_28 : f32 to vector<16x256xf32>
    %99 = arith.addf %98, %97 : vector<16x256xf32>
    %100 = arith.mulf %95, %99 : vector<16x256xf32>
    %cst_29 = arith.constant 1.42141378 : f32
    %101 = vector.broadcast %cst_29 : f32 to vector<16x256xf32>
    %102 = arith.addf %101, %100 : vector<16x256xf32>
    %103 = arith.mulf %95, %102 : vector<16x256xf32>
    %cst_30 = arith.constant -0.284496725 : f32
    %104 = vector.broadcast %cst_30 : f32 to vector<16x256xf32>
    %105 = arith.addf %104, %103 : vector<16x256xf32>
    %106 = arith.mulf %95, %105 : vector<16x256xf32>
    %cst_31 = arith.constant 0.254829586 : f32
    %107 = vector.broadcast %cst_31 : f32 to vector<16x256xf32>
    %108 = arith.addf %107, %106 : vector<16x256xf32>
    %109 = arith.mulf %95, %108 : vector<16x256xf32>
    %cst_32 = arith.constant 5.000000e-01 : f32
    %110 = vector.broadcast %cst_32 : f32 to vector<16x256xf32>
    %111 = arith.mulf %110, %109 : vector<16x256xf32>
    %cst_33 = arith.constant 0.000000e+00 : f32
    %112 = vector.broadcast %cst_33 : f32 to vector<16x256xf32>
    %113 = arith.subf %112, %90 : vector<16x256xf32>
    %114 = arith.mulf %113, %90 : vector<16x256xf32>
    %115 = math.exp %114 : vector<16x256xf32>
    %116 = arith.mulf %111, %115 : vector<16x256xf32>
    %cst_34 = arith.constant 1.000000e+00 : f32
    %117 = vector.broadcast %cst_34 : f32 to vector<16x256xf32>
    %118 = arith.subf %117, %116 : vector<16x256xf32>
    %cst_35 = arith.constant 0.000000e+00 : f32
    %119 = vector.broadcast %cst_35 : f32 to vector<16x256xf32>
    %120 = arith.cmpf oge, %87, %119 : vector<16x256xf32>
    %cst_36 = arith.constant 1.000000e+00 : f32
    %121 = vector.broadcast %cst_36 : f32 to vector<16x256xf32>
    %122 = arith.subf %121, %118 : vector<16x256xf32>
    %123 = arith.select %120, %118, %122 : vector<16x256xi1>, vector<16x256xf32>
    %124 = arith.mulf %87, %123 : vector<16x256xf32>
    %c0_37 = arith.constant 0 : index
    %c0_38 = arith.constant 0 : index
    %125 = vector.load %arg11[%c0_37, %c0_38] : memref<2x16xbf16, #tpu.memory_space<vmem>>, vector<2x16xbf16>
    %126 = arith.truncf %124 : vector<16x256xf32> to vector<16x256xbf16>
    %cst_39 = arith.constant dense<0.000000e+00> : vector<2x256xf32>
    %127 = tpu.matmul %125, %126, %cst_39 {dimension_numbers = #tpu.dot_dimension_numbers<[1], [0], [0], [1], [0, 0, 1, 1], [], []>} : vector<2x16xbf16>, vector<16x256xbf16>, vector<2x256xf32> -> vector<2x256xf32>
    %c0_40 = arith.constant 0 : index
    %c0_41 = arith.constant 0 : index
    %128 = vector.load %arg12[%c0_40, %c0_41] : memref<2x1xf32, #tpu.memory_space<vmem>>, vector<2x1xf32>
    %129 = vector.broadcast %128 : vector<2x1xf32> to vector<2x256xf32>
    %130 = arith.addf %127, %129 : vector<2x256xf32>
    %c7_i32 = arith.constant 7 : i32
    %131 = arith.cmpi ne, %arg1, %c7_i32 : i32
    %132 = arith.extui %131 : i1 to i32
    %c0_i32 = arith.constant 0 : i32
    %133 = arith.cmpi ne, %132, %c0_i32 : i32
    scf.if %133 {
      %c0_44 = arith.constant 0 : index
      %c0_45 = arith.constant 0 : index
      %c0_46 = arith.constant 0 : index
      %137 = vector.load %arg5[%c0_44, %c0_45, %c0_46] : memref<1x1x256xf32, #tpu.memory_space<vmem>>, vector<1x1x256xf32>
      %138 = vector.shape_cast %137 : vector<1x1x256xf32> to vector<1x256xf32>
      %139 = vector.broadcast %138 : vector<1x256xf32> to vector<2x256xf32>
      %140 = arith.mulf %130, %139 : vector<2x256xf32>
      %141 = arith.truncf %140 : vector<2x256xf32> to vector<2x256xbf16>
      %c0_47 = arith.constant 0 : index
      %c0_48 = arith.constant 0 : index
      %c0_49 = arith.constant 0 : index
      %c0_50 = arith.constant 0 : index
      %142 = vector.load %arg14[%c0_47, %c0_48, %c0_49, %c0_50] : memref<1x1x2x256xbf16, #tpu.memory_space<vmem>>, vector<1x1x2x256xbf16>
      %143 = vector.shape_cast %142 : vector<1x1x2x256xbf16> to vector<2x256xbf16>
      %144 = vector.shape_cast %141 : vector<2x256xbf16> to vector<1x1x2x256xbf16>
      tpu.vector_store %arg14[%c0_47, %c0_48, %c0_49, %c0_50], %144 {strides = array<i32>} : memref<1x1x2x256xbf16, #tpu.memory_space<vmem>>, vector<1x1x2x256xbf16>,
    } else {
    }
    %c7_i32_42 = arith.constant 7 : i32
    %134 = arith.cmpi eq, %arg1, %c7_i32_42 : i32
    %135 = arith.extui %134 : i1 to i32
    %c0_i32_43 = arith.constant 0 : i32
    %136 = arith.cmpi ne, %135, %c0_i32_43 : i32
    scf.if %136 {
      %137 = vector.extract_strided_slice %7 {offsets = [0, 73], sizes = [4, 256], strides = [1, 1]} : vector<4x512xf32> to vector<4x256xf32>
      %138 = arith.truncf %137 : vector<4x256xf32> to vector<4x256xbf16>
      %c0_44 = arith.constant 0 : index
      %c0_45 = arith.constant 0 : index
      %139 = vector.load %arg13[%c0_44, %c0_45] : memref<2x4xbf16, #tpu.memory_space<vmem>>, vector<2x4xbf16>
      %cst_46 = arith.constant dense<0.000000e+00> : vector<2x256xf32>
      %140 = tpu.matmul %139, %138, %cst_46 {dimension_numbers = #tpu.dot_dimension_numbers<[1], [0], [0], [1], [0, 0, 1, 1], [], []>} : vector<2x4xbf16>, vector<4x256xbf16>, vector<2x256xf32> -> vector<2x256xf32>
      %141 = arith.addf %130, %140 : vector<2x256xf32>
      %142 = arith.truncf %141 : vector<2x256xf32> to vector<2x256xbf16>
      %c0_47 = arith.constant 0 : index
      %c0_48 = arith.constant 0 : index
      %c0_49 = arith.constant 0 : index
      %c0_50 = arith.constant 0 : index
      %143 = vector.load %arg14[%c0_47, %c0_48, %c0_49, %c0_50] : memref<1x1x2x256xbf16, #tpu.memory_space<vmem>>, vector<1x1x2x256xbf16>
      %144 = vector.shape_cast %143 : vector<1x1x2x256xbf16> to vector<2x256xbf16>
      %145 = vector.shape_cast %142 : vector<2x256xbf16> to vector<1x1x2x256xbf16>
      tpu.vector_store %arg14[%c0_47, %c0_48, %c0_49, %c0_50], %145 {strides = array<i32>} : memref<1x1x2x256xbf16, #tpu.memory_space<vmem>>, vector<1x1x2x256xbf16>,
    } else {
    }
    return
  }
  func.func @transform_0(%arg0: i32, %arg1: i32, %arg2: i32) -> (i32, i32, i32, i32) {
    %c0_i32 = arith.constant 0 : i32
    %c0_i32_0 = arith.constant 0 : i32
    %c0_i32_1 = arith.constant 0 : i32
    %c0_i32_2 = arith.constant 0 : i32
    return %arg0, %c0_i32, %c0_i32_0, %c0_i32_1 : i32, i32, i32, i32
  }
  func.func @transform_1(%arg0: i32, %arg1: i32, %arg2: i32) -> (i32, i32, i32, i32) {
    %c0_i32 = arith.constant 0 : i32
    %c0_i32_0 = arith.constant 0 : i32
    %c0_i32_1 = arith.constant 0 : i32
    %c0_i32_2 = arith.constant 0 : i32
    return %arg1, %c0_i32, %c0_i32_0, %c0_i32_1 : i32, i32, i32, i32
  }
  func.func @transform_2(%arg0: i32, %arg1: i32, %arg2: i32) -> (i32, i32, i32) {
    %c0_i32 = arith.constant 0 : i32
    %c0_i32_0 = arith.constant 0 : i32
    return %arg1, %c0_i32, %arg2 : i32, i32, i32
  }
  func.func @transform_3(%arg0: i32, %arg1: i32, %arg2: i32) -> (i32, i32) {
    %c0_i32 = arith.constant 0 : i32
    %c0_i32_0 = arith.constant 0 : i32
    %c0_i32_1 = arith.constant 0 : i32
    return %c0_i32, %c0_i32_0 : i32, i32
  }
  func.func @transform_4(%arg0: i32, %arg1: i32, %arg2: i32) -> (i32, i32) {
    %c0_i32 = arith.constant 0 : i32
    %c0_i32_0 = arith.constant 0 : i32
    %c0_i32_1 = arith.constant 0 : i32
    return %c0_i32, %c0_i32_0 : i32, i32
  }
  func.func @transform_5(%arg0: i32, %arg1: i32, %arg2: i32) -> (i32, i32) {
    %c0_i32 = arith.constant 0 : i32
    %c0_i32_0 = arith.constant 0 : i32
    %c0_i32_1 = arith.constant 0 : i32
    return %c0_i32, %c0_i32_0 : i32, i32
  }
  func.func @transform_6(%arg0: i32, %arg1: i32, %arg2: i32) -> (i32, i32) {
    %c0_i32 = arith.constant 0 : i32
    %c0_i32_0 = arith.constant 0 : i32
    %c0_i32_1 = arith.constant 0 : i32
    return %c0_i32, %c0_i32_0 : i32, i32
  }
  func.func @transform_7(%arg0: i32, %arg1: i32, %arg2: i32) -> (i32, i32) {
    %c0_i32 = arith.constant 0 : i32
    %c0_i32_0 = arith.constant 0 : i32
    %c0_i32_1 = arith.constant 0 : i32
    return %c0_i32, %c0_i32_0 : i32, i32
  }
  func.func @transform_8(%arg0: i32, %arg1: i32, %arg2: i32) -> (i32, i32) {
    %c0_i32 = arith.constant 0 : i32
    %c0_i32_0 = arith.constant 0 : i32
    %c0_i32_1 = arith.constant 0 : i32
    return %c0_i32, %c0_i32_0 : i32, i32
  }
  func.func @transform_9(%arg0: i32, %arg1: i32, %arg2: i32) -> (i32, i32) {
    %c0_i32 = arith.constant 0 : i32
    %c0_i32_0 = arith.constant 0 : i32
    %c0_i32_1 = arith.constant 0 : i32
    return %c0_i32, %c0_i32_0 : i32, i32
  }
  func.func @transform_10(%arg0: i32, %arg1: i32, %arg2: i32) -> (i32, i32) {
    %c0_i32 = arith.constant 0 : i32
    %c0_i32_0 = arith.constant 0 : i32
    %c0_i32_1 = arith.constant 0 : i32
    return %c0_i32, %c0_i32_0 : i32, i32
  }
  func.func @transform_11(%arg0: i32, %arg1: i32, %arg2: i32) -> (i32, i32, i32, i32) {
    %c0_i32 = arith.constant 0 : i32
    %c0_i32_0 = arith.constant 0 : i32
    return %arg0, %arg1, %c0_i32, %arg2 : i32, i32, i32, i32
  }
}

</mosaic_0001>

<llo_original>
// kernel: _lambda_.1
$region0: #{_lambda_.1}
  #allocation0 [shape = 'u32[]', space=smem, size = 0x4, offset = 0x4, fixed_abs, tag = 'smem constant byte address 0x4 - core index']
  #allocation1 [shape = 'u32[144,128]{1,0:T(1,128)}', space=vmem, size = 0x12000, scoped, tag = 'internal scratch']
  %s0 = inlined_call_operand.vmem [shape: f32[2,4,3,256], index: 0, kind: input, shape index: {}]
  %s1 = inlined_call_operand.vmem [shape: f32[8,8,4,1], index: 1, kind: input, shape index: {}]
  %s2 = inlined_call_operand.vmem [shape: f32[8,1,512], index: 2, kind: input, shape index: {}]
  %s3 = inlined_call_operand.vmem [shape: f32[4,1], index: 3, kind: input, shape index: {}]
  %s4 = inlined_call_operand.vmem [shape: f32[4,1], index: 4, kind: input, shape index: {}]
  %s5 = inlined_call_operand.vmem [shape: f32[4,1], index: 5, kind: input, shape index: {}]
  %s6 = inlined_call_operand.vmem [shape: bf16[16,4], index: 6, kind: input, shape index: {}]
  %s7 = inlined_call_operand.vmem [shape: f32[16,1], index: 7, kind: input, shape index: {}]
  %s8 = inlined_call_operand.vmem [shape: bf16[2,16], index: 8, kind: input, shape index: {}]
  %s9 = inlined_call_operand.vmem [shape: f32[2,1], index: 9, kind: input, shape index: {}]
  %s10 = inlined_call_operand.vmem [shape: bf16[2,4], index: 10, kind: input, shape index: {}]
  %s11 = inlined_call_operand.vmem [shape: bf16[2,8,2,512], index: 11, kind: output, shape index: {}]
  %s12 = sld [smem:[#allocation0]]
  $region85: #{_lambda_.1} parent=0
    _
  %s14 = ssub.s32 1, %s12
  %s15 = scalar_select 0, %s14, %s12
  loop: start=0, step=1, limit=34
  $region2: #{_lambda_.1} parent=0 // loop_pre_header
    _
  $region3: #{_lambda_.1} parent=0 // loop_header
    %s17 = sphi 0, %s21
    %p18 = scmp.ge.s32.totalorder %s17, 34
    %s24 = sphi 0, %s43
    %s25 = sphi 0, %s39
    %s26 = sphi 0, %s35
    %s27 = sphi 0, %s24
    %s28 = sphi 0, %s25
    %s29 = sphi 0, %s26
    %s30 = sphi 0, %s27
    %s31 = sphi 0, %s28
    %s32 = sphi 0, %s29
    %s46 = sphi 0, %s48
    %s49 = sphi 0, %s46
    %s50 = sphi 0, %s49
    %s66 = sphi 0, %s50
    %s72 = sphi 0, %s74
    %s75 = sphi 0, %s72
    %s76 = sphi 0, %s75
    %s92 = sphi 0, %s76
    %s100 = sphi 0, %s102
    %s103 = sphi 0, %s100
    %s104 = sphi 0, %s103
    %s120 = sphi 0, %s104
    %s124 = sphi 0, %s124
    %s126 = sphi 0, %s124
    %s127 = sphi 0, %s126
    %s141 = sphi 0, %s127
    %s145 = sphi 0, %s145
    %s147 = sphi 0, %s145
    %s148 = sphi 0, %s147
    %s162 = sphi 0, %s148
    %s166 = sphi 0, %s166
    %s168 = sphi 0, %s166
    %s169 = sphi 0, %s168
    %s183 = sphi 0, %s169
    %s187 = sphi 0, %s187
    %s189 = sphi 0, %s187
    %s190 = sphi 0, %s189
    %s204 = sphi 0, %s190
    %s208 = sphi 0, %s208
    %s210 = sphi 0, %s208
    %s211 = sphi 0, %s210
    %s225 = sphi 0, %s211
    %s229 = sphi 0, %s229
    %s231 = sphi 0, %s229
    %s232 = sphi 0, %s231
    %s246 = sphi 0, %s232
    %s250 = sphi 0, %s250
    %s252 = sphi 0, %s250
    %s253 = sphi 0, %s252
    %s267 = sphi 0, %s253
    %s271 = sphi 0, %s271
    %s273 = sphi 0, %s271
    %s274 = sphi 0, %s273
    %s288 = sphi 0, %s274
    %s298 = sphi 0, %s300
    %s301 = sphi 0, %s298
    %s302 = sphi 0, %s301
    %s318 = sphi 0, %s302
  $region4: #{_lambda_.1} parent=0 // loop_header_branch
    %20 = sbr.rel (%p18) target = $region8
  $region5: #{_lambda_.1} parent=0 // loop_body
    %s22 = ssub.s32 %s17, 1
    %s23 = ssub.s32 %s17, 2
    %s33 = sadd.s32 1, %s26
    %p34 = scmp.ge.s32.totalorder %s33, 2
    %s35 = scalar_select %p34, 0, %s33
    %s36 = sadd.s32 1, %s25
    %s37 = scalar_select %p34, %s36, %s25
    %p38 = scmp.ge.s32.totalorder %s37, 8
    %s39 = scalar_select %p38, 0, %s37
    %s40 = sadd.s32 1, %s24
    %s41 = scalar_select %p38, %s40, %s24
    %p42 = scmp.ge.s32.totalorder %s41, 2
    %s43 = scalar_select %p42, 0, %s41
    %s44 = ssub.s32 %s24, %s43
    %p45 = scmp.eq.s32.totalorder %s44, 0
    %s47 = sadd.s32 %s46, 1
    %s48 = scalar_select %p45, %s46, %s47
    %p51 = pneg %p45
    %p52 = scmp.eq.s32.totalorder %s17, 31
    %p53 = por %p51, %p52
    %p54 = scmp.ne.s32.totalorder %s46, %s49
    %p55 = scmp.eq.s32.totalorder %s17, 0
    %p56 = por %p54, %p55
    %p57 = scmp.ne.s32.totalorder %s46, %s49
    %p58 = scmp.eq.s32.totalorder %s22, 31
    %p59 = por %p57, %p58
    %p60 = scmp.ne.s32.totalorder %s49, %s50
    %p61 = scmp.eq.s32.totalorder %s22, 0
    %p62 = por %p60, %p61
    %p63 = scmp.ne.s32.totalorder %s49, %s50
    %p64 = scmp.eq.s32.totalorder %s23, 31
    %p65 = por %p63, %p64
    %p67 = scmp.ne.s32.totalorder %s50, %s66
    %p68 = scmp.eq.s32.totalorder %s23, 0
    %p69 = por %p67, %p68
    %s70 = ssub.s32 %s25, %s39
    %p71 = scmp.eq.s32.totalorder %s70, 0
    %s73 = sadd.s32 %s72, 1
    %s74 = scalar_select %p71, %s72, %s73
    %p77 = pneg %p71
    %p78 = scmp.eq.s32.totalorder %s17, 31
    %p79 = por %p77, %p78
    %p80 = scmp.ne.s32.totalorder %s72, %s75
    %p81 = scmp.eq.s32.totalorder %s17, 0
    %p82 = por %p80, %p81
    %p83 = scmp.ne.s32.totalorder %s72, %s75
    %p84 = scmp.eq.s32.totalorder %s22, 31
    %p85 = por %p83, %p84
    %p86 = scmp.ne.s32.totalorder %s75, %s76
    %p87 = scmp.eq.s32.totalorder %s22, 0
    %p88 = por %p86, %p87
    %p89 = scmp.ne.s32.totalorder %s75, %s76
    %p90 = scmp.eq.s32.totalorder %s23, 31
    %p91 = por %p89, %p90
    %p93 = scmp.ne.s32.totalorder %s76, %s92
    %p94 = scmp.eq.s32.totalorder %s23, 0
    %p95 = por %p93, %p94
    %s96 = ssub.s32 %s25, %s39
    %s97 = ssub.s32 %s26, %s35
    %s98 = sor.u32 %s96, %s97
    %p99 = scmp.eq.s32.totalorder %s98, 0
    %s101 = sadd.s32 %s100, 1
    %s102 = scalar_select %p99, %s100, %s101
    %p105 = pneg %p99
    %p106 = scmp.eq.s32.totalorder %s17, 31
    %p107 = por %p105, %p106
    %p108 = scmp.ne.s32.totalorder %s100, %s103
    %p109 = scmp.eq.s32.totalorder %s17, 0
    %p110 = por %p108, %p109
    %p111 = scmp.ne.s32.totalorder %s100, %s103
    %p112 = scmp.eq.s32.totalorder %s22, 31
    %p113 = por %p111, %p112
    %p114 = scmp.ne.s32.totalorder %s103, %s104
    %p115 = scmp.eq.s32.totalorder %s22, 0
    %p116 = por %p114, %p115
    %p117 = scmp.ne.s32.totalorder %s103, %s104
    %p118 = scmp.eq.s32.totalorder %s23, 31
    %p119 = por %p117, %p118
    %p121 = scmp.ne.s32.totalorder %s104, %s120
    %p122 = scmp.eq.s32.totalorder %s23, 0
    %p123 = por %p121, %p122
    %s125 = sadd.s32 %s124, 1
    %p128 = scmp.eq.s32.totalorder %s17, 31
    %p129 = scmp.ne.s32.totalorder %s124, %s126
    %p130 = scmp.eq.s32.totalorder %s17, 0
    %p131 = por %p129, %p130
    %p132 = scmp.ne.s32.totalorder %s124, %s126
    %p133 = scmp.eq.s32.totalorder %s22, 31
    %p134 = por %p132, %p133
    %p135 = scmp.ne.s32.totalorder %s126, %s127
    %p136 = scmp.eq.s32.totalorder %s22, 0
    %p137 = por %p135, %p136
    %p138 = scmp.ne.s32.totalorder %s126, %s127
    %p139 = scmp.eq.s32.totalorder %s23, 31
    %p140 = por %p138, %p139
    %p142 = scmp.ne.s32.totalorder %s127, %s141
    %p143 = scmp.eq.s32.totalorder %s23, 0
    %p144 = por %p142, %p143
    %s146 = sadd.s32 %s145, 1
    %p149 = scmp.eq.s32.totalorder %s17, 31
    %p150 = scmp.ne.s32.totalorder %s145, %s147
    %p151 = scmp.eq.s32.totalorder %s17, 0
    %p152 = por %p150, %p151
    %p153 = scmp.ne.s32.totalorder %s145, %s147
    %p154 = scmp.eq.s32.totalorder %s22, 31
    %p155 = por %p153, %p154
    %p156 = scmp.ne.s32.totalorder %s147, %s148
    %p157 = scmp.eq.s32.totalorder %s22, 0
    %p158 = por %p156, %p157
    %p159 = scmp.ne.s32.totalorder %s147, %s148
    %p160 = scmp.eq.s32.totalorder %s23, 31
    %p161 = por %p159, %p160
    %p163 = scmp.ne.s32.totalorder %s148, %s162
    %p164 = scmp.eq.s32.totalorder %s23, 0
    %p165 = por %p163, %p164
    %s167 = sadd.s32 %s166, 1
    %p170 = scmp.eq.s32.totalorder %s17, 31
    %p171 = scmp.ne.s32.totalorder %s166, %s168
    %p172 = scmp.eq.s32.totalorder %s17, 0
    %p173 = por %p171, %p172
    %p174 = scmp.ne.s32.totalorder %s166, %s168
    %p175 = scmp.eq.s32.totalorder %s22, 31
    %p176 = por %p174, %p175
    %p177 = scmp.ne.s32.totalorder %s168, %s169
    %p178 = scmp.eq.s32.totalorder %s22, 0
    %p179 = por %p177, %p178
    %p180 = scmp.ne.s32.totalorder %s168, %s169
    %p181 = scmp.eq.s32.totalorder %s23, 31
    %p182 = por %p180, %p181
    %p184 = scmp.ne.s32.totalorder %s169, %s183
    %p185 = scmp.eq.s32.totalorder %s23, 0
    %p186 = por %p184, %p185
    %s188 = sadd.s32 %s187, 1
    %p191 = scmp.eq.s32.totalorder %s17, 31
    %p192 = scmp.ne.s32.totalorder %s187, %s189
    %p193 = scmp.eq.s32.totalorder %s17, 0
    %p194 = por %p192, %p193
    %p195 = scmp.ne.s32.totalorder %s187, %s189
    %p196 = scmp.eq.s32.totalorder %s22, 31
    %p197 = por %p195, %p196
    %p198 = scmp.ne.s32.totalorder %s189, %s190
    %p199 = scmp.eq.s32.totalorder %s22, 0
    %p200 = por %p198, %p199
    %p201 = scmp.ne.s32.totalorder %s189, %s190
    %p202 = scmp.eq.s32.totalorder %s23, 31
    %p203 = por %p201, %p202
    %p205 = scmp.ne.s32.totalorder %s190, %s204
    %p206 = scmp.eq.s32.totalorder %s23, 0
    %p207 = por %p205, %p206
    %s209 = sadd.s32 %s208, 1
    %p212 = scmp.eq.s32.totalorder %s17, 31
    %p213 = scmp.ne.s32.totalorder %s208, %s210
    %p214 = scmp.eq.s32.totalorder %s17, 0
    %p215 = por %p213, %p214
    %p216 = scmp.ne.s32.totalorder %s208, %s210
    %p217 = scmp.eq.s32.totalorder %s22, 31
    %p218 = por %p216, %p217
    %p219 = scmp.ne.s32.totalorder %s210, %s211
    %p220 = scmp.eq.s32.totalorder %s22, 0
    %p221 = por %p219, %p220
    %p222 = scmp.ne.s32.totalorder %s210, %s211
    %p223 = scmp.eq.s32.totalorder %s23, 31
    %p224 = por %p222, %p223
    %p226 = scmp.ne.s32.totalorder %s211, %s225
    %p227 = scmp.eq.s32.totalorder %s23, 0
    %p228 = por %p226, %p227
    %s230 = sadd.s32 %s229, 1
    %p233 = scmp.eq.s32.totalorder %s17, 31
    %p234 = scmp.ne.s32.totalorder %s229, %s231
    %p235 = scmp.eq.s32.totalorder %s17, 0
    %p236 = por %p234, %p235
    %p237 = scmp.ne.s32.totalorder %s229, %s231
    %p238 = scmp.eq.s32.totalorder %s22, 31
    %p239 = por %p237, %p238
    %p240 = scmp.ne.s32.totalorder %s231, %s232
    %p241 = scmp.eq.s32.totalorder %s22, 0
    %p242 = por %p240, %p241
    %p243 = scmp.ne.s32.totalorder %s231, %s232
    %p244 = scmp.eq.s32.totalorder %s23, 31
    %p245 = por %p243, %p244
    %p247 = scmp.ne.s32.totalorder %s232, %s246
    %p248 = scmp.eq.s32.totalorder %s23, 0
    %p249 = por %p247, %p248
    %s251 = sadd.s32 %s250, 1
    %p254 = scmp.eq.s32.totalorder %s17, 31
    %p255 = scmp.ne.s32.totalorder %s250, %s252
    %p256 = scmp.eq.s32.totalorder %s17, 0
    %p257 = por %p255, %p256
    %p258 = scmp.ne.s32.totalorder %s250, %s252
    %p259 = scmp.eq.s32.totalorder %s22, 31
    %p260 = por %p258, %p259
    %p261 = scmp.ne.s32.totalorder %s252, %s253
    %p262 = scmp.eq.s32.totalorder %s22, 0
    %p263 = por %p261, %p262
    %p264 = scmp.ne.s32.totalorder %s252, %s253
    %p265 = scmp.eq.s32.totalorder %s23, 31
    %p266 = por %p264, %p265
    %p268 = scmp.ne.s32.totalorder %s253, %s267
    %p269 = scmp.eq.s32.totalorder %s23, 0
    %p270 = por %p268, %p269
    %s272 = sadd.s32 %s271, 1
    %p275 = scmp.eq.s32.totalorder %s17, 31
    %p276 = scmp.ne.s32.totalorder %s271, %s273
    %p277 = scmp.eq.s32.totalorder %s17, 0
    %p278 = por %p276, %p277
    %p279 = scmp.ne.s32.totalorder %s271, %s273
    %p280 = scmp.eq.s32.totalorder %s22, 31
    %p281 = por %p279, %p280
    %p282 = scmp.ne.s32.totalorder %s273, %s274
    %p283 = scmp.eq.s32.totalorder %s22, 0
    %p284 = por %p282, %p283
    %p285 = scmp.ne.s32.totalorder %s273, %s274
    %p286 = scmp.eq.s32.totalorder %s23, 31
    %p287 = por %p285, %p286
    %p289 = scmp.ne.s32.totalorder %s274, %s288
    %p290 = scmp.eq.s32.totalorder %s23, 0
    %p291 = por %p289, %p290
    %s292 = ssub.s32 %s24, %s43
    %s293 = ssub.s32 %s25, %s39
    %s294 = sor.u32 %s292, %s293
    %s295 = ssub.s32 %s26, %s35
    %s296 = sor.u32 %s294, %s295
    %p297 = scmp.eq.s32.totalorder %s296, 0
    %s299 = sadd.s32 %s298, 1
    %s300 = scalar_select %p297, %s298, %s299
    %p303 = pneg %p297
    %p304 = scmp.eq.s32.totalorder %s17, 31
    %p305 = por %p303, %p304
    %p306 = scmp.ne.s32.totalorder %s298, %s301
    %p307 = scmp.eq.s32.totalorder %s17, 0
    %p308 = por %p306, %p307
    %p309 = scmp.ne.s32.totalorder %s298, %s301
    %p310 = scmp.eq.s32.totalorder %s22, 31
    %p311 = por %p309, %p310
    %p312 = scmp.ne.s32.totalorder %s301, %s302
    %p313 = scmp.eq.s32.totalorder %s22, 0
    %p314 = por %p312, %p313
    %p315 = scmp.ne.s32.totalorder %s301, %s302
    %p316 = scmp.eq.s32.totalorder %s23, 31
    %p317 = por %p315, %p316
    %p319 = scmp.ne.s32.totalorder %s302, %s318
    %p320 = scmp.eq.s32.totalorder %s23, 0
    %p321 = por %p319, %p320
    %p322 = scmp.le.s32.totalorder 1, %s17
    %p323 = scmp.lt.s32.totalorder %s17, 33
    %p324 = pnand %p322, %p323
    %p325 = pneg %p324
    // Predicated region
    $region9: #{_lambda_.1} parent=5 // pred_check
      _
    $region10: #{_lambda_.1} parent=5 // pred_check_branch
      %327 = sbr.rel (%p324) target = $region12
    $region11: #{_lambda_.1} parent=5 // pred_region
      %s328 = ssub.s32 %s17, 1
      // Predicated region
      $region13: #{_lambda_.1} parent=11 // pred_check
        %p329 = pneg %p137
      $region14: #{_lambda_.1} parent=11 // pred_check_branch
        %331 = sbr.rel (%p329) target = $region16
      $region15: #{_lambda_.1} parent=11 // pred_region
        _
      $region16: #{_lambda_.1} parent=11 // pred_fallthru
        _
      // Predicated region
      $region17: #{_lambda_.1} parent=11 // pred_check
        %p332 = pneg %p158
      $region18: #{_lambda_.1} parent=11 // pred_check_branch
        %334 = sbr.rel (%p332) target = $region20
      $region19: #{_lambda_.1} parent=11 // pred_region
        _
      $region20: #{_lambda_.1} parent=11 // pred_fallthru
        _
      // Predicated region
      $region21: #{_lambda_.1} parent=11 // pred_check
        %p335 = pneg %p179
      $region22: #{_lambda_.1} parent=11 // pred_check_branch
        %337 = sbr.rel (%p335) target = $region24
      $region23: #{_lambda_.1} parent=11 // pred_region
        _
      $region24: #{_lambda_.1} parent=11 // pred_fallthru
        _
      // Predicated region
      $region25: #{_lambda_.1} parent=11 // pred_check
        %p338 = pneg %p200
      $region26: #{_lambda_.1} parent=11 // pred_check_branch
        %340 = sbr.rel (%p338) target = $region28
      $region27: #{_lambda_.1} parent=11 // pred_region
        _
      $region28: #{_lambda_.1} parent=11 // pred_fallthru
        _
      // Predicated region
      $region29: #{_lambda_.1} parent=11 // pred_check
        %p341 = pneg %p221
      $region30: #{_lambda_.1} parent=11 // pred_check_branch
        %343 = sbr.rel (%p341) target = $region32
      $region31: #{_lambda_.1} parent=11 // pred_region
        _
      $region32: #{_lambda_.1} parent=11 // pred_fallthru
        _
      // Predicated region
      $region33: #{_lambda_.1} parent=11 // pred_check
        %p344 = pneg %p242
      $region34: #{_lambda_.1} parent=11 // pred_check_branch
        %346 = sbr.rel (%p344) target = $region36
      $region35: #{_lambda_.1} parent=11 // pred_region
        _
      $region36: #{_lambda_.1} parent=11 // pred_fallthru
        _
      // Predicated region
      $region37: #{_lambda_.1} parent=11 // pred_check
        %p347 = pneg %p263
      $region38: #{_lambda_.1} parent=11 // pred_check_branch
        %349 = sbr.rel (%p347) target = $region40
      $region39: #{_lambda_.1} parent=11 // pred_region
        _
      $region40: #{_lambda_.1} parent=11 // pred_fallthru
        _
      // Predicated region
      $region41: #{_lambda_.1} parent=11 // pred_check
        %p350 = pneg %p284
      $region42: #{_lambda_.1} parent=11 // pred_check_branch
        %352 = sbr.rel (%p350) target = $region44
      $region43: #{_lambda_.1} parent=11 // pred_region
        _
      $region44: #{_lambda_.1} parent=11 // pred_fallthru
        _
    $region12: #{_lambda_.1} parent=5 // pred_fallthru
      _
    %p353 = scmp.lt.s32.totalorder %s17, 32
    // Predicated region
    $region45: #{_lambda_.1} parent=5 // pred_check
      %p354 = pneg %p353
    $region46: #{_lambda_.1} parent=5 // pred_check_branch
      %356 = sbr.rel (%p354) target = $region48
    $region47: #{_lambda_.1} parent=5 // pred_region
      // Predicated region
      $region49: #{_lambda_.1} parent=47 // pred_check
        %p357 = pneg %p56
      $region50: #{_lambda_.1} parent=47 // pred_check_branch
        %359 = sbr.rel (%p357) target = $region52
      $region51: #{_lambda_.1} parent=47 // pred_region
        %p360 = scmp.lt.s32.totalorder %s24, 1
        %s361 = scalar_select %p360, %s24, 1
        %s362 = smul.addr %s361, 8
        %s363 = smul.addr %s362, 4
        %s364 = scalar_lea.vmem %s0, %s363
      $region52: #{_lambda_.1} parent=47 // pred_fallthru
        _
      // Predicated region
      $region53: #{_lambda_.1} parent=47 // pred_check
        %p365 = pneg %p82
      $region54: #{_lambda_.1} parent=47 // pred_check_branch
        %367 = sbr.rel (%p365) target = $region56
      $region55: #{_lambda_.1} parent=47 // pred_region
        %p368 = scmp.lt.s32.totalorder %s25, 7
        %s369 = scalar_select %p368, %s25, 7
        %s370 = smul.addr %s369, 8
        %s371 = smul.addr %s370, 4
        %s372 = scalar_lea.vmem %s1, %s371
      $region56: #{_lambda_.1} parent=47 // pred_fallthru
        _
      // Predicated region
      $region57: #{_lambda_.1} parent=47 // pred_check
        %p373 = pneg %p110
      $region58: #{_lambda_.1} parent=47 // pred_check_branch
        %375 = sbr.rel (%p373) target = $region60
      $region59: #{_lambda_.1} parent=47 // pred_region
        %s376 = smul.u32 2, %s26
        %p377 = scmp.lt.s32.totalorder %s25, 7
        %s378 = scalar_select %p377, %s25, 7
        %p379 = scmp.lt.s32.totalorder %s376, 3
        %s380 = scalar_select %p379, %s376, 3
        %s381 = smul.addr %s378, 4
        %s382 = sadd.s32 %s380, %s381
        %s383 = scalar_lea.vmem %s2, %s382
        %s384 = smul.u32 2, %s26
      $region60: #{_lambda_.1} parent=47 // pred_fallthru
        _
    $region48: #{_lambda_.1} parent=5 // pred_fallthru
      _
    %p385 = scmp.le.s32.totalorder 1, %s17
    %p386 = scmp.lt.s32.totalorder %s17, 33
    %p387 = pnand %p385, %p386
    %p388 = pneg %p387
    // Predicated region
    $region61: #{_lambda_.1} parent=5 // pred_check
      _
    $region62: #{_lambda_.1} parent=5 // pred_check_branch
      %390 = sbr.rel (%p387) target = $region64
    $region63: #{_lambda_.1} parent=5 // pred_region
      %s391 = ssub.s32 %s17, 1
      %p392 = scmp.lt.s32.totalorder %s27, 1
      %s393 = scalar_select %p392, %s27, 1
      %s394 = smul.addr %s393, 8
      %s395 = smul.addr %s394, 4
      %s396 = scalar_lea.vmem %s0, %s395
      %p397 = pneg %p62
      %p398 = pneg %p59
      %p399 = scmp.lt.s32.totalorder %s28, 7
      %s400 = scalar_select %p399, %s28, 7
      %s401 = smul.addr %s400, 8
      %s402 = smul.addr %s401, 4
      %s403 = scalar_lea.vmem %s1, %s402
      %p404 = pneg %p88
      %p405 = pneg %p85
      %s406 = smul.u32 2, %s29
      %p407 = scmp.lt.s32.totalorder %s28, 7
      %s408 = scalar_select %p407, %s28, 7
      %p409 = scmp.lt.s32.totalorder %s406, 3
      %s410 = scalar_select %p409, %s406, 3
      %s411 = smul.addr %s408, 4
      %s412 = sadd.s32 %s410, %s411
      %s413 = scalar_lea.vmem %s2, %s412
      %p414 = pneg %p116
      %p415 = pneg %p113
      %p416 = pneg %p137
      %p417 = pneg %p134
      %p418 = pneg %p158
      %p419 = pneg %p155
      %p420 = pneg %p179
      %p421 = pneg %p176
      %p422 = pneg %p200
      %p423 = pneg %p197
      %p424 = pneg %p221
      %p425 = pneg %p218
      %p426 = pneg %p242
      %p427 = pneg %p239
      %p428 = pneg %p263
      %p429 = pneg %p260
      %p430 = pneg %p284
      %p431 = pneg %p281
      %p432 = pneg %p314
      %p433 = pneg %p311
      %s434 = smul.u32 2, %s29
      %p435 = scmp.lt.s32.totalorder %s27, 1
      %s436 = scalar_select %p435, %s27, 1
      %p437 = scmp.lt.s32.totalorder %s28, 7
      %s438 = scalar_select %p437, %s28, 7
      %p439 = scmp.lt.s32.totalorder %s434, 3
      %s440 = scalar_select %p439, %s434, 3
      %s441 = smul.addr %s438, 4
      %s442 = sadd.s32 %s440, %s441
      %s443 = smul.addr %s436, 32
      %s444 = sadd.s32 %s442, %s443
      %s445 = scalar_lea.vmem %s11, %s444
      %p446 = scmp.lt.s32.totalorder %s27, 1
      %s447 = scalar_select %p446, %s27, 1
      %s448 = smul.addr %s447, 8
      %s449 = smul.addr %s448, 4
      %s450 = scalar_lea.vmem %s0, %s449
      %p451 = scmp.lt.s32.totalorder %s28, 7
      %s452 = scalar_select %p451, %s28, 7
      %s453 = smul.addr %s452, 8
      %s454 = smul.addr %s453, 4
      %s455 = scalar_lea.vmem %s1, %s454
      %s456 = smul.u32 2, %s29
      %p457 = scmp.lt.s32.totalorder %s28, 7
      %s458 = scalar_select %p457, %s28, 7
      %p459 = scmp.lt.s32.totalorder %s456, 3
      %s460 = scalar_select %p459, %s456, 3
      %s461 = smul.addr %s458, 4
      %s462 = sadd.s32 %s460, %s461
      %s463 = scalar_lea.vmem %s2, %s462
      %s464 = smul.u32 2, %s29
      %s465 = smul.u32 2, %s29
      %p466 = scmp.lt.s32.totalorder %s27, 1
      %s467 = scalar_select %p466, %s27, 1
      %p468 = scmp.lt.s32.totalorder %s28, 7
      %s469 = scalar_select %p468, %s28, 7
      %p470 = scmp.lt.s32.totalorder %s465, 3
      %s471 = scalar_select %p470, %s465, 3
      %s472 = smul.addr %s469, 4
      %s473 = sadd.s32 %s471, %s472
      %s474 = smul.addr %s467, 32
      %s475 = sadd.s32 %s473, %s474
      %s476 = scalar_lea.vmem %s11, %s475
      %s477 = smul.u32 2, %s29
      %s479 = sshra.s32 %s29, 2
      %s480 = sand.u32 %s29, 3
      %s481 = sshra.s32 %s29, 2
      %s482 = sand.u32 %s29, 3
      %s483 = smul.u32 %s479, 2
      %s484 = smul.u32 %s483, 4
      %s485 = sadd.s32 %s484, %s482
      %s486 = scalar_lea.vmem %s450, %s485
      %v487 = vld [vmem:[%s486] ss:$4 sm:$0x3]
      %s488 = sadd.s32 8, %s485
      %s489 = scalar_lea.vmem %s450, %s488
      %v490 = vld [vmem:[%s489] ss:$4 sm:$0x3]
      %s491 = sadd.s32 16, %s485
      %s492 = scalar_lea.vmem %s450, %s491
      %v493 = vld [vmem:[%s492] ss:$4 sm:$0x3]
      %s494 = sadd.s32 24, %s485
      %s495 = scalar_lea.vmem %s450, %s494
      %v496 = vld [vmem:[%s495] ss:$4 sm:$0x3]
      %s497 = sadd.s32 %s29, 1
      %s498 = sshra.s32 %s497, 2
      %s499 = sand.u32 %s497, 3
      %s500 = sshra.s32 %s497, 2
      %s501 = sand.u32 %s497, 3
      %s502 = smul.u32 %s498, 2
      %s503 = smul.u32 %s502, 4
      %s504 = sadd.s32 %s503, %s501
      %s505 = scalar_lea.vmem %s450, %s504
      %v506 = vld [vmem:[%s505] ss:$4 sm:$0x3]
      %s507 = sadd.s32 8, %s504
      %s508 = scalar_lea.vmem %s450, %s507
      %v509 = vld [vmem:[%s508] ss:$4 sm:$0x3]
      %s510 = sadd.s32 16, %s504
      %s511 = scalar_lea.vmem %s450, %s510
      %v512 = vld [vmem:[%s511] ss:$4 sm:$0x3]
      %s513 = sadd.s32 24, %s504
      %s514 = scalar_lea.vmem %s450, %s513
      %v515 = vld [vmem:[%s514] ss:$4 sm:$0x3]
      %v520 = vcombine.low %v487, %v490
      %v521 = vcombine.low %v493, %v496
      %v523 = vunpack.c.l.s4 1966171168
      %v524 = vunpack.c.0.s8 %v523
      %v525 = vlaneseq
      %v526 = vshrl.u32 %v525, 7
      %v527 = vsub.s32 %v524, %v526
      %v528 = vrot.slane %v520, %v527
      %v530 = vunpack.c.l.s4 1966171168
      %v531 = vunpack.c.0.s8 %v530
      %v532 = vlaneseq
      %v533 = vshrl.u32 %v532, 7
      %v534 = vsub.s32 %v531, %v533
      %v535 = vrot.slane %v521, %v534
      %v536 = vcombine.low %v528, %v535
      %v537 = vcombine.high %v528, %v535
      %v539 = vunpack.c.l.s4 1966171168
      %v540 = vunpack.c.0.s8 %v539
      %v541 = vlaneseq
      %v542 = vshrl.u32 %v541, 7
      %v543 = vsub.s32 %v540, %v542
      %v544 = vrot.slane %v536, %v543
      %v546 = vunpack.c.l.s4 1966171168
      %v547 = vunpack.c.0.s8 %v546
      %v548 = vlaneseq
      %v549 = vshrl.u32 %v548, 7
      %v550 = vsub.s32 %v547, %v549
      %v551 = vrot.slane %v537, %v550
      %v558 = vcombine.low %v506, %v509
      %v559 = vcombine.low %v512, %v515
      %v561 = vunpack.c.l.s4 1966171168
      %v562 = vunpack.c.0.s8 %v561
      %v563 = vlaneseq
      %v564 = vshrl.u32 %v563, 7
      %v565 = vsub.s32 %v562, %v564
      %v566 = vrot.slane %v558, %v565
      %v568 = vunpack.c.l.s4 1966171168
      %v569 = vunpack.c.0.s8 %v568
      %v570 = vlaneseq
      %v571 = vshrl.u32 %v570, 7
      %v572 = vsub.s32 %v569, %v571
      %v573 = vrot.slane %v559, %v572
      %v574 = vcombine.low %v566, %v573
      %v576 = vunpack.c.l.s4 1966171168
      %v577 = vunpack.c.0.s8 %v576
      %v578 = vlaneseq
      %v579 = vshrl.u32 %v578, 7
      %v580 = vsub.s32 %v577, %v579
      %v581 = vrot.slane %v574, %v580
      %v583 = vld [vmem:[%s455] sm:$0xf]
      %v584 = vld [vmem:[%s455 + $0x4] sm:$0xf]
      %v585 = vld [vmem:[%s455 + $0x8] sm:$0xf]
      %v586 = vld [vmem:[%s455 + $0xc] sm:$0xf]
      %v587 = vld [vmem:[%s455 + $0x10] sm:$0xf]
      %v588 = vld [vmem:[%s455 + $0x14] sm:$0xf]
      %v589 = vld [vmem:[%s455 + $0x18] sm:$0xf]
      %v590 = vld [vmem:[%s455 + $0x1c] sm:$0xf]
      %592 = vset.pattern.permute.xlu0 0
      %593 = vperm.xlu0 %592, %v583
      %v594 = vpop.permute.xlu0 %593
      %v596 = vmul.f32 %v594, %v544
      %v597 = vmul.f32 %v594, %v551
      %599 = vset.pattern.permute.xlu0 0
      %600 = vperm.xlu0 %599, %v584
      %v601 = vpop.permute.xlu0 %600
      %v603 = vmul.f32 %v601, %v544
      %v604 = vmul.f32 %v601, %v551
      %v605 = vmul.f32 %v601, %v581
      %609 = vrot.lane.b32.xlu0 %v603, 127
      %v610 = vpop.permute.xlu0 %609
      %611 = vrot.lane.b32.xlu0 %v604, 127
      %v612 = vpop.permute.xlu0 %611
      %613 = vrot.lane.b32.xlu0 %v605, 127
      %v614 = vpop.permute.xlu0 %613
      %vm615 = vcmask 1039360
      %v616 = vsel %vm615, %v610, %v612
      %v617 = vsel %vm615, %v612, %v614
      %v620 = vadd.f32 %v596, %v616
      %v621 = vadd.f32 %v597, %v617
      %623 = vset.pattern.permute.xlu0 0
      %624 = vperm.xlu0 %623, %v585
      %v625 = vpop.permute.xlu0 %624
      %v627 = vmul.f32 %v625, %v544
      %v628 = vmul.f32 %v625, %v551
      %v629 = vmul.f32 %v625, %v581
      %633 = vrot.lane.b32.xlu0 %v627, 120
      %v634 = vpop.permute.xlu0 %633
      %635 = vrot.lane.b32.xlu0 %v628, 120
      %v636 = vpop.permute.xlu0 %635
      %637 = vrot.lane.b32.xlu0 %v629, 120
      %v638 = vpop.permute.xlu0 %637
      %vm639 = vcmask 982016
      %v640 = vsel %vm639, %v634, %v636
      %v641 = vsel %vm639, %v636, %v638
      %v644 = vadd.f32 %v620, %v640
      %v645 = vadd.f32 %v621, %v641
      %647 = vset.pattern.permute.xlu0 0
      %648 = vperm.xlu0 %647, %v586
      %v649 = vpop.permute.xlu0 %648
      %v651 = vmul.f32 %v649, %v544
      %v652 = vmul.f32 %v649, %v551
      %v653 = vmul.f32 %v649, %v581
      %657 = vrot.lane.b32.xlu0 %v651, 119
      %v658 = vpop.permute.xlu0 %657
      %659 = vrot.lane.b32.xlu0 %v652, 119
      %v660 = vpop.permute.xlu0 %659
      %661 = vrot.lane.b32.xlu0 %v653, 119
      %v662 = vpop.permute.xlu0 %661
      %vm663 = vcmask 973824
      %v664 = vsel %vm663, %v658, %v660
      %v665 = vsel %vm663, %v660, %v662
      %v668 = vadd.f32 %v644, %v664
      %v669 = vadd.f32 %v645, %v665
      %671 = vset.pattern.permute.xlu0 0
      %672 = vperm.xlu0 %671, %v587
      %v673 = vpop.permute.xlu0 %672
      %v675 = vmul.f32 %v673, %v544
      %v676 = vmul.f32 %v673, %v551
      %v677 = vmul.f32 %v673, %v581
      %681 = vrot.lane.b32.xlu0 %v675, 64
      %v682 = vpop.permute.xlu0 %681
      %683 = vrot.lane.b32.xlu0 %v676, 64
      %v684 = vpop.permute.xlu0 %683
      %685 = vrot.lane.b32.xlu0 %v677, 64
      %v686 = vpop.permute.xlu0 %685
      %vm687 = vcmask 523264
      %v688 = vsel %vm687, %v682, %v684
      %v689 = vsel %vm687, %v684, %v686
      %v692 = vadd.f32 %v668, %v688
      %v693 = vadd.f32 %v669, %v689
      %695 = vset.pattern.permute.xlu0 0
      %696 = vperm.xlu0 %695, %v588
      %v697 = vpop.permute.xlu0 %696
      %v699 = vmul.f32 %v697, %v544
      %v700 = vmul.f32 %v697, %v551
      %v701 = vmul.f32 %v697, %v581
      %705 = vrot.lane.b32.xlu0 %v699, 63
      %v706 = vpop.permute.xlu0 %705
      %707 = vrot.lane.b32.xlu0 %v700, 63
      %v708 = vpop.permute.xlu0 %707
      %709 = vrot.lane.b32.xlu0 %v701, 63
      %v710 = vpop.permute.xlu0 %709
      %vm711 = vcmask 515072
      %v712 = vsel %vm711, %v706, %v708
      %v713 = vsel %vm711, %v708, %v710
      %v716 = vadd.f32 %v692, %v712
      %v717 = vadd.f32 %v693, %v713
      %719 = vset.pattern.permute.xlu0 0
      %720 = vperm.xlu0 %719, %v589
      %v721 = vpop.permute.xlu0 %720
      %v723 = vmul.f32 %v721, %v544
      %v724 = vmul.f32 %v721, %v551
      %v725 = vmul.f32 %v721, %v581
      %729 = vrot.lane.b32.xlu0 %v723, 56
      %v730 = vpop.permute.xlu0 %729
      %731 = vrot.lane.b32.xlu0 %v724, 56
      %v732 = vpop.permute.xlu0 %731
      %733 = vrot.lane.b32.xlu0 %v725, 56
      %v734 = vpop.permute.xlu0 %733
      %vm735 = vcmask 457728
      %v736 = vsel %vm735, %v730, %v732
      %v737 = vsel %vm735, %v732, %v734
      %v740 = vadd.f32 %v716, %v736
      %v741 = vadd.f32 %v717, %v737
      %743 = vset.pattern.permute.xlu0 0
      %744 = vperm.xlu0 %743, %v590
      %v745 = vpop.permute.xlu0 %744
      %v747 = vmul.f32 %v745, %v544
      %v748 = vmul.f32 %v745, %v551
      %v749 = vmul.f32 %v745, %v581
      %753 = vrot.lane.b32.xlu0 %v747, 55
      %v754 = vpop.permute.xlu0 %753
      %755 = vrot.lane.b32.xlu0 %v748, 55
      %v756 = vpop.permute.xlu0 %755
      %757 = vrot.lane.b32.xlu0 %v749, 55
      %v758 = vpop.permute.xlu0 %757
      %vm759 = vcmask 449536
      %v760 = vsel %vm759, %v754, %v756
      %v761 = vsel %vm759, %v756, %v758
      %v764 = vadd.f32 %v740, %v760
      %v765 = vadd.f32 %v741, %v761
      %v766 = vld [vmem:[%s3] sm:$0xf]
      %768 = vset.pattern.permute.xlu0 0
      %769 = vperm.xlu0 %768, %v766
      %v770 = vpop.permute.xlu0 %769
      %v772 = vadd.f32 %v764, %v770
      %v773 = vadd.f32 %v765, %v770
      %vm774 = vcmask 1043456
      %v775 = vsel %vm774, %v772, 0.0
      %v776 = vrot.slane %v775, 4
      %v777 = vadd.f32 %v775, %v776
      %v778 = vrot.slane %v777, 2
      %v779 = vadd.f32 %v777, %v778
      %v780 = vrot.slane %v779, 1
      %v781 = vadd.f32 %v779, %v780
      %v782 = vsel %vm774, %v773, 0.0
      %v783 = vrot.slane %v782, 4
      %v784 = vadd.f32 %v782, %v783
      %v785 = vrot.slane %v784, 2
      %v786 = vadd.f32 %v784, %v785
      %v787 = vrot.slane %v786, 1
      %v788 = vadd.f32 %v786, %v787
      %v789 = vrcp.pop 4.0
      %v790 = vmul.f32 %v781, %v789
      %v791 = vmul.f32 %v788, %v789
      %v792 = vsub.f32 %v772, %v790
      %v793 = vsub.f32 %v773, %v791
      %v794 = vmul.f32 %v792, %v792
      %v795 = vmul.f32 %v793, %v793
      %v796 = vsel %vm774, %v794, 0.0
      %v797 = vrot.slane %v796, 4
      %v798 = vadd.f32 %v796, %v797
      %v799 = vrot.slane %v798, 2
      %v800 = vadd.f32 %v798, %v799
      %v801 = vrot.slane %v800, 1
      %v802 = vadd.f32 %v800, %v801
      %v803 = vsel %vm774, %v795, 0.0
      %v804 = vrot.slane %v803, 4
      %v805 = vadd.f32 %v803, %v804
      %v806 = vrot.slane %v805, 2
      %v807 = vadd.f32 %v805, %v806
      %v808 = vrot.slane %v807, 1
      %v809 = vadd.f32 %v807, %v808
      %v810 = vmul.f32 %v802, %v789
      %v811 = vmul.f32 %v809, %v789
      %v812 = vadd.f32 %v810, 1e-06
      %v813 = vadd.f32 %v811, 1e-06
      %v814 = vrsqrt.pop %v812
      %v815 = vrsqrt.pop %v813
      %v816 = vmul.f32 %v792, %v814
      %v817 = vmul.f32 %v793, %v815
      %v818 = vld [vmem:[%s4] sm:$0xf]
      %820 = vset.pattern.permute.xlu0 0
      %821 = vperm.xlu0 %820, %v818
      %v822 = vpop.permute.xlu0 %821
      %v824 = vmul.f32 %v816, %v822
      %v825 = vmul.f32 %v817, %v822
      %v826 = vld [vmem:[%s5] sm:$0xf]
      %828 = vset.pattern.permute.xlu0 0
      %829 = vperm.xlu0 %828, %v826
      %v830 = vpop.permute.xlu0 %829
      %v832 = vadd.f32 %v824, %v830
      %v833 = vadd.f32 %v825, %v830
      %v834 = vld [vmem:[%s6] sm:$0xf]
      %v835 = vld [vmem:[%s6 + $0x4] sm:$0xf]
      %v836 = vpack.c.bf16 %v832, %v832
      %v837 = vpack.c.bf16 %v833, %v833
      %v838 = vld [vmem:[%s7] sm:$0xff]
      %v839 = vld [vmem:[%s7 + $0x8] sm:$0xff]
      %841 = vset.pattern.permute.xlu0 0
      %842 = vperm.xlu0 %841, %v838
      %v843 = vpop.permute.xlu0 %842
      %846 = vset.pattern.permute.xlu0 0
      %847 = vperm.xlu0 %846, %v839
      %v848 = vpop.permute.xlu0 %847
      %v852 = vunpack.c.l.b16 %v834
      %v853 = vunpack.c.l.b16 %v835
      %v854 = vpack.c.b16 %v853, %v852
      %vm855 = vcmask 31744
      %v857 = vsel %vm855, %v854, 0
      %vm859 = vcmask 1041408
      %v861 = vsel %vm859, %v836, 0
      %v864 = vsel %vm859, %v837, 0
      %866 = vmatprep.subr.bf16.mxu0 %v864
      %867 = vmatpush1.bf16.msra.mxu0 %v861
      %868 = vmatprep.subr.bf16.mxu0 0
      %869 = vmatpush1.bf16.msra.mxu0 0
      %870 = vmatprep.subr.bf16.mxu0 0
      %871 = vmatpush1.bf16.msra.mxu0 0
      %872 = vmatprep.subr.bf16.mxu0 0
      %873 = vmatpush1.bf16.msra.mxu0 0
      %874 = vmatprep.subr.bf16.mxu0 0
      %875 = vmatpush1.bf16.msra.mxu0 0
      %876 = vmatprep.subr.bf16.mxu0 0
      %877 = vmatpush1.bf16.msra.mxu0 0
      %878 = vmatprep.subr.bf16.mxu0 0
      %879 = vmatpush1.bf16.msra.mxu0 0
      %880 = vmatprep.subr.bf16.mxu0 0
      %881 = vmatpush1.bf16.msra.mxu0 0
      %882 = vmatprep.subr.bf16.mxu0 0
      %883 = vmatpush1.bf16.msra.mxu0 0
      %884 = vmatprep.subr.bf16.mxu0 0
      %885 = vmatpush1.bf16.msra.mxu0 0
      %886 = vmatprep.subr.bf16.mxu0 0
      %887 = vmatpush1.bf16.msra.mxu0 0
      %888 = vmatprep.subr.bf16.mxu0 0
      %889 = vmatpush1.bf16.msra.mxu0 0
      %890 = vmatprep.subr.bf16.mxu0 0
      %891 = vmatpush1.bf16.msra.mxu0 0
      %892 = vmatprep.subr.bf16.mxu0 0
      %893 = vmatpush1.bf16.msra.mxu0 0
      %894 = vmatprep.subr.bf16.mxu0 0
      %895 = vmatpush1.bf16.msra.mxu0 0
      %896 = vmatprep.subr.bf16.mxu0 0
      %897 = vmatpush1.bf16.msra.mxu0 0
      %898 = vmatprep.mubr.bf16.mxu0 0
      %899 = vmatmul.mubr.bf16.gmra.mrb[0].mxu0 %v857
      %v900 = vpop.f32.mrb[0].mxu0
      %v901 = vadd.f32 %v843, %v900
      %v902 = vpop.f32.mrb[0].mxu0
      %v903 = vadd.f32 %v843, %v902
      %v904 = vpop.f32.mrb[0].mxu0
      %v905 = vadd.f32 %v848, %v904
      %v906 = vpop.f32.mrb[0].mxu0
      %v907 = vadd.f32 %v848, %v906
      %908 = vdwg.mxu0
      %v909 = vand.u32 2147483647, %v901
      %v910 = vand.u32 2147483647, %v903
      %v911 = vand.u32 2147483647, %v905
      %v912 = vand.u32 2147483647, %v907
      %v913 = vmul.f32 %v909, 0.70710677
      %v914 = vmul.f32 %v910, 0.70710677
      %v915 = vmul.f32 %v911, 0.70710677
      %v916 = vmul.f32 %v912, 0.70710677
      %v917 = vmul.f32 %v913, 0.3275911
      %v918 = vmul.f32 %v914, 0.3275911
      %v919 = vmul.f32 %v915, 0.3275911
      %v920 = vmul.f32 %v916, 0.3275911
      %v921 = vadd.f32 %v917, 1.0
      %v922 = vadd.f32 %v918, 1.0
      %v923 = vadd.f32 %v919, 1.0
      %v924 = vadd.f32 %v920, 1.0
      %v925 = vrcp.pop %v921
      %v926 = vrcp.pop %v922
      %v927 = vrcp.pop %v923
      %v928 = vrcp.pop %v924
      %v929 = vmul.f32 %v925, 1.0614054
      %v930 = vmul.f32 %v926, 1.0614054
      %v931 = vmul.f32 %v927, 1.0614054
      %v932 = vmul.f32 %v928, 1.0614054
      %v933 = vadd.f32 %v929, -1.4531521
      %v934 = vadd.f32 %v930, -1.4531521
      %v935 = vadd.f32 %v931, -1.4531521
      %v936 = vadd.f32 %v932, -1.4531521
      %v937 = vmul.f32 %v925, %v933
      %v938 = vmul.f32 %v926, %v934
      %v939 = vmul.f32 %v927, %v935
      %v940 = vmul.f32 %v928, %v936
      %v941 = vadd.f32 %v937, 1.4214138
      %v942 = vadd.f32 %v938, 1.4214138
      %v943 = vadd.f32 %v939, 1.4214138
      %v944 = vadd.f32 %v940, 1.4214138
      %v945 = vmul.f32 %v925, %v941
      %v946 = vmul.f32 %v926, %v942
      %v947 = vmul.f32 %v927, %v943
      %v948 = vmul.f32 %v928, %v944
      %v949 = vadd.f32 %v945, -0.28449672
      %v950 = vadd.f32 %v946, -0.28449672
      %v951 = vadd.f32 %v947, -0.28449672
      %v952 = vadd.f32 %v948, -0.28449672
      %v953 = vmul.f32 %v925, %v949
      %v954 = vmul.f32 %v926, %v950
      %v955 = vmul.f32 %v927, %v951
      %v956 = vmul.f32 %v928, %v952
      %v957 = vadd.f32 %v953, 0.2548296
      %v958 = vadd.f32 %v954, 0.2548296
      %v959 = vadd.f32 %v955, 0.2548296
      %v960 = vadd.f32 %v956, 0.2548296
      %v961 = vmul.f32 %v925, %v957
      %v962 = vmul.f32 %v926, %v958
      %v963 = vmul.f32 %v927, %v959
      %v964 = vmul.f32 %v928, %v960
      %v965 = vmul.f32 %v961, 0.5
      %v966 = vmul.f32 %v962, 0.5
      %v967 = vmul.f32 %v963, 0.5
      %v968 = vmul.f32 %v964, 0.5
      %v969 = vsub.f32 0.0, %v913
      %v970 = vsub.f32 0.0, %v914
      %v971 = vsub.f32 0.0, %v915
      %v972 = vsub.f32 0.0, %v916
      %v973 = vmul.f32 %v969, %v913
      %v974 = vmul.f32 %v970, %v914
      %v975 = vmul.f32 %v971, %v915
      %v976 = vmul.f32 %v972, %v916
      %v977 = vmul.f32 %v973, 1.442695
      %v978 = vpow.pop %v977
      %v979 = vmul.f32 %v974, 1.442695
      %v980 = vpow.pop %v979
      %v981 = vmul.f32 %v975, 1.442695
      %v982 = vpow.pop %v981
      %v983 = vmul.f32 %v976, 1.442695
      %v984 = vpow.pop %v983
      %v985 = vmul.f32 %v965, %v978
      %v986 = vmul.f32 %v966, %v980
      %v987 = vmul.f32 %v967, %v982
      %v988 = vmul.f32 %v968, %v984
      %v989 = vsub.f32 1.0, %v985
      %v990 = vsub.f32 1.0, %v986
      %v991 = vsub.f32 1.0, %v987
      %v992 = vsub.f32 1.0, %v988
      %vm993 = vcmp.ge.f32.partialorder %v901, 0.0
      %vm994 = vcmp.ge.f32.partialorder %v903, 0.0
      %vm995 = vcmp.ge.f32.partialorder %v905, 0.0
      %vm996 = vcmp.ge.f32.partialorder %v907, 0.0
      %v997 = vsub.f32 1.0, %v989
      %v998 = vsub.f32 1.0, %v990
      %v999 = vsub.f32 1.0, %v991
      %v1000 = vsub.f32 1.0, %v992
      %v1001 = vsel %vm993, %v989, %v997
      %v1002 = vsel %vm994, %v990, %v998
      %v1003 = vsel %vm995, %v991, %v999
      %v1004 = vsel %vm996, %v992, %v1000
      %v1005 = vmul.f32 %v901, %v1001
      %v1006 = vmul.f32 %v903, %v1002
      %v1007 = vmul.f32 %v905, %v1003
      %v1008 = vmul.f32 %v907, %v1004
      %v1009 = vld [vmem:[%s8] sm:$0x1]
      %v1010 = vpack.c.bf16 %v1007, %v1005
      %v1011 = vpack.c.bf16 %v1008, %v1006
      %v1012 = vld [vmem:[%s9] sm:$0x3]
      %1014 = vset.pattern.permute.xlu0 0
      %1015 = vperm.xlu0 %1014, %v1012
      %v1016 = vpop.permute.xlu0 %1015
      %vm1018 = vcmask 130048
      %v1020 = vsel %vm1018, %v1009, 0
      %1022 = vmatprep.subr.bf16.mxu0 %v1011
      %1023 = vmatpush1.bf16.msra.mxu0 %v1010
      %1024 = vmatprep.subr.bf16.mxu0 0
      %1025 = vmatpush1.bf16.msra.mxu0 0
      %1026 = vmatprep.subr.bf16.mxu0 0
      %1027 = vmatpush1.bf16.msra.mxu0 0
      %1028 = vmatprep.subr.bf16.mxu0 0
      %1029 = vmatpush1.bf16.msra.mxu0 0
      %1030 = vmatprep.subr.bf16.mxu0 0
      %1031 = vmatpush1.bf16.msra.mxu0 0
      %1032 = vmatprep.subr.bf16.mxu0 0
      %1033 = vmatpush1.bf16.msra.mxu0 0
      %1034 = vmatprep.subr.bf16.mxu0 0
      %1035 = vmatpush1.bf16.msra.mxu0 0
      %1036 = vmatprep.subr.bf16.mxu0 0
      %1037 = vmatpush1.bf16.msra.mxu0 0
      %1038 = vmatprep.subr.bf16.mxu0 0
      %1039 = vmatpush1.bf16.msra.mxu0 0
      %1040 = vmatprep.subr.bf16.mxu0 0
      %1041 = vmatpush1.bf16.msra.mxu0 0
      %1042 = vmatprep.subr.bf16.mxu0 0
      %1043 = vmatpush1.bf16.msra.mxu0 0
      %1044 = vmatprep.subr.bf16.mxu0 0
      %1045 = vmatpush1.bf16.msra.mxu0 0
      %1046 = vmatprep.subr.bf16.mxu0 0
      %1047 = vmatpush1.bf16.msra.mxu0 0
      %1048 = vmatprep.subr.bf16.mxu0 0
      %1049 = vmatpush1.bf16.msra.mxu0 0
      %1050 = vmatprep.subr.bf16.mxu0 0
      %1051 = vmatpush1.bf16.msra.mxu0 0
      %1052 = vmatprep.subr.bf16.mxu0 0
      %1053 = vmatpush1.bf16.msra.mxu0 0
      %1054 = vmatprep.mubr.bf16.mxu0 0
      %1055 = vmatmul.mubr.bf16.gmra.mrb[0].mxu0 %v1020
      %v1056 = vpop.f32.mrb[0].mxu0
      %v1057 = vadd.f32 %v1016, %v1056
      %v1058 = vpop.f32.mrb[0].mxu0
      %v1059 = vadd.f32 %v1016, %v1058
      %v1060 = vpop.f32.mrb[0].mxu0
      %v1061 = vpop.f32.mrb[0].mxu0
      %1062 = vdwg.mxu0
      %p1063 = scmp.ne.s32.totalorder %s28, 7
      // Predicated region
      $region65: #{_lambda_.1} parent=63 // pred_check
        %p1064 = pneg %p1063
      $region66: #{_lambda_.1} parent=63 // pred_check_branch
        %1066 = sbr.rel (%p1064) target = $region68
      $region67: #{_lambda_.1} parent=63 // pred_region
        %v1067 = vld [vmem:[%s463] sm:$0x3]
        %v1069 = vlaneseq
        %v1070 = vshrl.u32 %v1069, 7
        %v1071 = vsub.s32 0, %v1070
        %v1072 = vrot.slane %v1067, %v1071
        %v1073 = vlaneseq
        %v1074 = vshrl.u32 %v1073, 7
        %v1075 = vsub.s32 1, %v1074
        %v1076 = vrot.slane %v1067, %v1075
        %v1079 = vmul.f32 %v1057, %v1072
        %v1080 = vmul.f32 %v1059, %v1076
        %v1081 = vpack.c.bf16 %v1079, %v1079
        %v1082 = vpack.c.bf16 %v1080, %v1080
        %v1085 = vcombine.low %v1081, %v1082
        %v1087 = vunpack.c.l.s4 1966171168
        %v1088 = vunpack.c.0.s8 %v1087
        %v1089 = vlaneseq
        %v1090 = vshrl.u32 %v1089, 7
        %v1091 = vsub.s32 %v1088, %v1090
        %v1092 = vrot.slane %v1085, %v1091
        %v1094 = vunpack.c.l.s4 1966171168
        %v1095 = vunpack.c.0.s8 %v1094
        %v1096 = vlaneseq
        %v1097 = vshrl.u32 %v1096, 7
        %v1098 = vsub.s32 %v1095, %v1097
        %v1099 = vrot.slane %v1092, %v1098
        %1101 = vst [vmem:[%s476] sm:$0x3] %v1099
      $region68: #{_lambda_.1} parent=63 // pred_fallthru
        _
      %p1102 = scmp.eq.s32.totalorder %s28, 7
      // Predicated region
      $region69: #{_lambda_.1} parent=63 // pred_check
        %p1103 = pneg %p1102
      $region70: #{_lambda_.1} parent=63 // pred_check_branch
        %1105 = sbr.rel (%p1103) target = $region72
      $region71: #{_lambda_.1} parent=63 // pred_region
        %v1106 = vpack.c.bf16 %v544, %v544
        %v1107 = vpack.c.bf16 %v551, %v551
        %v1108 = vpack.c.bf16 %v581, %v581
        %v1109 = vld [vmem:[%s10] sm:$0x1]
        %1113 = vrot.lane.b32.xlu0 %v1106, 55
        %v1114 = vpop.permute.xlu0 %1113
        %1115 = vrot.lane.b32.xlu0 %v1107, 55
        %v1116 = vpop.permute.xlu0 %1115
        %1117 = vrot.lane.b32.xlu0 %v1108, 55
        %v1118 = vpop.permute.xlu0 %1117
        %vm1119 = vcmask 449536
        %v1120 = vsel %vm1119, %v1114, %v1116
        %v1121 = vsel %vm1119, %v1116, %v1118
        %v1123 = vsel %vm855, %v1109, 0
        %v1126 = vsel %vm859, %v1120, 0
        %v1129 = vsel %vm859, %v1121, 0
        %1131 = vmatprep.subr.bf16.mxu0 %v1129
        %1132 = vmatpush1.bf16.msra.mxu0 %v1126
        %1133 = vmatprep.subr.bf16.mxu0 0
        %1134 = vmatpush1.bf16.msra.mxu0 0
        %1135 = vmatprep.subr.bf16.mxu0 0
        %1136 = vmatpush1.bf16.msra.mxu0 0
        %1137 = vmatprep.subr.bf16.mxu0 0
        %1138 = vmatpush1.bf16.msra.mxu0 0
        %1139 = vmatprep.subr.bf16.mxu0 0
        %1140 = vmatpush1.bf16.msra.mxu0 0
        %1141 = vmatprep.subr.bf16.mxu0 0
        %1142 = vmatpush1.bf16.msra.mxu0 0
        %1143 = vmatprep.subr.bf16.mxu0 0
        %1144 = vmatpush1.bf16.msra.mxu0 0
        %1145 = vmatprep.subr.bf16.mxu0 0
        %1146 = vmatpush1.bf16.msra.mxu0 0
        %1147 = vmatprep.subr.bf16.mxu0 0
        %1148 = vmatpush1.bf16.msra.mxu0 0
        %1149 = vmatprep.subr.bf16.mxu0 0
        %1150 = vmatpush1.bf16.msra.mxu0 0
        %1151 = vmatprep.subr.bf16.mxu0 0
        %1152 = vmatpush1.bf16.msra.mxu0 0
        %1153 = vmatprep.subr.bf16.mxu0 0
        %1154 = vmatpush1.bf16.msra.mxu0 0
        %1155 = vmatprep.subr.bf16.mxu0 0
        %1156 = vmatpush1.bf16.msra.mxu0 0
        %1157 = vmatprep.subr.bf16.mxu0 0
        %1158 = vmatpush1.bf16.msra.mxu0 0
        %1159 = vmatprep.subr.bf16.mxu0 0
        %1160 = vmatpush1.bf16.msra.mxu0 0
        %1161 = vmatprep.subr.bf16.mxu0 0
        %1162 = vmatpush1.bf16.msra.mxu0 0
        %1163 = vmatprep.mubr.bf16.mxu0 0
        %1164 = vmatmul.mubr.bf16.gmra.mrb[0].mxu0 %v1123
        %v1165 = vpop.f32.mrb[0].mxu0
        %v1166 = vadd.f32 0.0, %v1165
        %v1167 = vpop.f32.mrb[0].mxu0
        %v1168 = vadd.f32 0.0, %v1167
        %v1169 = vpop.f32.mrb[0].mxu0
        %v1170 = vpop.f32.mrb[0].mxu0
        %1171 = vdwg.mxu0
        %v1172 = vadd.f32 %v1057, %v1166
        %v1173 = vadd.f32 %v1059, %v1168
        %v1174 = vpack.c.bf16 %v1172, %v1172
        %v1175 = vpack.c.bf16 %v1173, %v1173
        %v1178 = vcombine.low %v1174, %v1175
        %v1180 = vunpack.c.l.s4 1966171168
        %v1181 = vunpack.c.0.s8 %v1180
        %v1182 = vlaneseq
        %v1183 = vshrl.u32 %v1182, 7
        %v1184 = vsub.s32 %v1181, %v1183
        %v1185 = vrot.slane %v1178, %v1184
        %v1187 = vunpack.c.l.s4 1966171168
        %v1188 = vunpack.c.0.s8 %v1187
        %v1189 = vlaneseq
        %v1190 = vshrl.u32 %v1189, 7
        %v1191 = vsub.s32 %v1188, %v1190
        %v1192 = vrot.slane %v1185, %v1191
        %1194 = vst [vmem:[%s476] sm:$0x3] %v1192
      $region72: #{_lambda_.1} parent=63 // pred_fallthru
        _
      %s1195 = smul.u32 2, %s29
      %p1196 = scmp.lt.s32.totalorder %s27, 1
      %s1197 = scalar_select %p1196, %s27, 1
      %p1198 = scmp.lt.s32.totalorder %s28, 7
      %s1199 = scalar_select %p1198, %s28, 7
      %p1200 = scmp.lt.s32.totalorder %s1195, 3
      %s1201 = scalar_select %p1200, %s1195, 3
      %s1202 = smul.addr %s1199, 4
      %s1203 = sadd.s32 %s1201, %s1202
      %s1204 = smul.addr %s1197, 32
      %s1205 = sadd.s32 %s1203, %s1204
      %s1206 = scalar_lea.vmem %s11, %s1205
      // Predicated region
      $region73: #{_lambda_.1} parent=63 // pred_check
        %p1207 = pneg %p311
      $region74: #{_lambda_.1} parent=63 // pred_check_branch
        %1209 = sbr.rel (%p1207) target = $region76
      $region75: #{_lambda_.1} parent=63 // pred_region
        %s1210 = smul.u32 2, %s29
      $region76: #{_lambda_.1} parent=63 // pred_fallthru
        _
    $region64: #{_lambda_.1} parent=5 // pred_fallthru
      _
    %p1211 = scmp.le.s32.totalorder 2, %s17
    // Predicated region
    $region77: #{_lambda_.1} parent=5 // pred_check
      %p1212 = pneg %p1211
    $region78: #{_lambda_.1} parent=5 // pred_check_branch
      %1214 = sbr.rel (%p1212) target = $region80
    $region79: #{_lambda_.1} parent=5 // pred_region
      %s1215 = ssub.s32 %s17, 2
      // Predicated region
      $region81: #{_lambda_.1} parent=79 // pred_check
        %p1216 = pneg %p317
      $region82: #{_lambda_.1} parent=79 // pred_check_branch
        %1218 = sbr.rel (%p1216) target = $region84
      $region83: #{_lambda_.1} parent=79 // pred_region
        %s1219 = smul.u32 2, %s32
        %p1220 = scmp.lt.s32.totalorder %s30, 1
        %s1221 = scalar_select %p1220, %s30, 1
        %p1222 = scmp.lt.s32.totalorder %s31, 7
        %s1223 = scalar_select %p1222, %s31, 7
        %p1224 = scmp.lt.s32.totalorder %s1219, 3
        %s1225 = scalar_select %p1224, %s1219, 3
        %s1226 = smul.addr %s1223, 4
        %s1227 = sadd.s32 %s1225, %s1226
        %s1228 = smul.addr %s1221, 32
        %s1229 = sadd.s32 %s1227, %s1228
        %s1230 = scalar_lea.vmem %s11, %s1229
      $region84: #{_lambda_.1} parent=79 // pred_fallthru
        _
    $region80: #{_lambda_.1} parent=5 // pred_fallthru
      _
  $region6: #{_lambda_.1} parent=0 // loop_footer
    %s21 = sadd.s32 1, %s17
  $region7: #{_lambda_.1} parent=0 // loop_footer_branch
    %16 = sbr.rel target = $region3
  $region8: #{_lambda_.1} parent=0 // loop_exit
    _

</llo_original>
